<compile_context>
chip_gen: v7x
topology: tpu7x:2x2x1
jax: 0.10.0
libtpu: 0.0.40
codegen_flags: <defaults>
</compile_context>

<pallas_src>
import math

import jax
import jax.numpy as jnp
from jax.experimental import pallas as pl
from jax.experimental.pallas import tpu as pltpu


def _make_mha_kernel(block_h, d_head, acc_into_out):
    bh, dh = block_h, d_head

    def kernel(vl_ref,                        # SMEM prefetch: (B,) int32
               q_ref, k_ref, v_ref,           # (block_b, S, D) bf16 tiles
               wq_ref, wk_ref, wv_ref,        # (n_hb, D, bh*dh) bf16, resident
               wo_ref,                        # (n_hb, bh*dh, Hp) bf16, resident
               out_ref,                       # (block_b, Sq, Hp)
               *scratch):                     # [] or [(block_b*Sq, Hp) f32]
        hb = pl.program_id(1)
        bt, sq, dq = q_ref.shape
        _, skv, dk = k_ref.shape
        dv = v_ref.shape[2]
        b0 = pl.program_id(0) * bt
        cdt = jnp.bfloat16

        # Flatten batch block into MXU rows (leading-dim merge only).
        q = q_ref[...].reshape(bt * sq, dq)
        k = k_ref[...].reshape(bt * skv, dk)
        v = v_ref[...].reshape(bt * skv, dv)

        # This head block's weight slabs (leading-axis dynamic index, no lane
        # slicing; weights stay VMEM-resident across all grid steps).
        wq = wq_ref[hb]                        # (dq, bh*dh)
        wk = wk_ref[hb]
        wv = wv_ref[hb]
        wo = wo_ref[hb]                        # (bh*dh, Hp)

        # Head-block projections: N = bh*dh (>= 256 at production sizes).
        # 1/sqrt(d_head) already folded into wq on the host.
        qh_all = jnp.dot(q, wq, preferred_element_type=jnp.float32)
        kh_all = jnp.dot(k, wk, preferred_element_type=jnp.float32)
        vh_all = jnp.dot(v, wv, preferred_element_type=jnp.float32)

        # Key mask, shape (bt, 1, skv): depends only on (batch, key).  Built
        # once per grid step, shared by all bh heads in the block.
        key_ids = jax.lax.broadcasted_iota(jnp.int32, (bt, 1, skv), 2)
        batch_ids = jax.lax.broadcasted_iota(jnp.int32, (bt, 1, skv), 0)
        vl = jnp.zeros((bt, 1, skv), jnp.int32)
        for i in range(bt):                    # bt is small and static
            vl = jnp.where(batch_ids == i, vl_ref[b0 + i], vl)
        mask = key_ids < vl                    # (bt, 1, skv) bool

        # Attention per head inside the block (static loop; scores/softmax f32).
        ctx_parts = []
        for hh in range(bh):
            lo = hh * dh
            qh = qh_all[:, lo:lo + dh].reshape(bt, sq, dh).astype(cdt)
            kh = kh_all[:, lo:lo + dh].reshape(bt, skv, dh).astype(cdt)
            vh = vh_all[:, lo:lo + dh].reshape(bt, skv, dh).astype(cdt)
            s = jnp.einsum('bqd,bkd->bqk', qh, kh,
                           preferred_element_type=jnp.float32)
            s = jnp.where(mask, s, jnp.float32(-1e6))       # d2l semantics
            s = s - jnp.max(s, axis=-1, keepdims=True)
            p = jnp.exp(s)
            p = p * pl.reciprocal(jnp.sum(p, axis=-1, keepdims=True),
                                  approx=True)
            c = jnp.einsum('bqk,bkd->bqd', p.astype(cdt), vh,
                           preferred_element_type=jnp.float32)
            ctx_parts.append(c.reshape(bt * sq, dh))

        ctx = ctx_parts[0] if bh == 1 else jnp.concatenate(ctx_parts, axis=-1)

        # W_o fold for this head block: single matmul with K = bh*dh.
        contrib = jnp.dot(ctx.astype(cdt), wo,
                          preferred_element_type=jnp.float32)  # (bt*sq, Hp)

        if acc_into_out:
            # f32 output: accumulate directly into the resident out_ref.
            @pl.when(hb == 0)
            def _():
                out_ref[...] = jnp.zeros_like(out_ref)
            out_ref[...] += contrib.reshape(out_ref.shape)
        else:
            acc_ref = scratch[0]
            @pl.when(hb == 0)
            def _():
                acc_ref[...] = jnp.zeros_like(acc_ref)
            acc_ref[...] += contrib
            @pl.when(hb == pl.num_programs(1) - 1)
            def _():
                out_ref[...] = acc_ref[...].reshape(out_ref.shape).astype(out_ref.dtype)

    return kernel


def _vmem_capacity_bytes():
    try:
        return int(pltpu.get_tpu_info().vmem_capacity_bytes)
    except Exception:
        return 128 << 20


def _pick_block_h(num_heads, d_head, target_cols=256):
    """Smallest divisor of num_heads with block_h*d_head >= target_cols."""
    for bhc in range(1, num_heads + 1):
        if num_heads % bhc == 0 and bhc * d_head >= target_cols:
            return bhc
    return num_heads


def _pick_block_b(B, Sq, target_rows, want_two_blocks):
    """Largest divisor of B with block_b*Sq <= target_rows.  On 2-TensorCore
    chips (want_two_blocks) keep >= 2 (preferably even) batch blocks."""
    cands = []
    for bb in range(1, B + 1):
        if B % bb:
            continue
        if bb > 1 and bb * Sq > target_rows:
            continue
        if want_two_blocks and B >= 2 and B // bb < 2:
            continue
        cands.append(bb)
    if not cands:
        return 1
    if want_two_blocks:
        even = [bb for bb in cands if (B // bb) % 2 == 0]
        if even:
            return max(even)
    return max(cands)


def multihead_attention(queries, keys, values, valid_lens,
                        W_q, W_k, W_v, W_o, num_heads,
                        block_b=None, block_h=None):
    """queries: (B, Sq, Dq), keys: (B, Skv, Dk), values: (B, Skv, Dv),
    valid_lens: (B,) int.  Weights are torch-Linear layout (out, in)."""
    B, Sq, Dq = queries.shape
    _, Skv, Dk = keys.shape
    _, _, Dv = values.shape
    H = W_q.shape[0]
    assert H % num_heads == 0
    d_head = H // num_heads
    out_dtype = queries.dtype

    # Lane-dense output width; skip padding entirely when already 128-aligned.
    Hp = H if H % 128 == 0 else max(128, pl.cdiv(H, 128) * 128)

    vmem_cap = _vmem_capacity_bytes()
    small_vmem = vmem_cap <= (64 << 20)          # v7x-like: 64 MiB VMEM, 2 TCs
    target_rows = 256 if small_vmem else 512     # bigger tiles on v5e/v6e

    if block_h is None:
        block_h = _pick_block_h(num_heads, d_head)
    assert num_heads % block_h == 0
    n_hb = num_heads // block_h

    if block_b is None:
        block_b = _pick_block_b(B, Sq, target_rows, want_two_blocks=small_vmem)
    assert B % block_b == 0

    scale = 1.0 / math.sqrt(d_head)
    cdt = jnp.bfloat16

    # bf16 activations on the host (halves DMA bytes + VMEM footprint).
    q_in = queries.astype(cdt)
    k_in = keys.astype(cdt)
    v_in = values.astype(cdt)

    # Head-block-major weights, (in, out) layout, bf16.  They are passed as
    # whole-array blocks with constant index_maps -> DMA'd once and resident;
    # the kernel picks its head block on the leading axis.
    wq_hb = (W_q.T * scale).reshape(Dq, n_hb, block_h * d_head) \
        .transpose(1, 0, 2).astype(cdt)
    wk_hb = W_k.T.reshape(Dk, n_hb, block_h * d_head).transpose(1, 0, 2).astype(cdt)
    wv_hb = W_v.T.reshape(Dv, n_hb, block_h * d_head).transpose(1, 0, 2).astype(cdt)
    wo_hb = jnp.pad(W_o.T.reshape(n_hb, block_h * d_head, H),
                    ((0, 0), (0, 0), (0, Hp - H))).astype(cdt)

    valid_lens = valid_lens.astype(jnp.int32)

    acc_into_out = (out_dtype == jnp.float32)
    kernel = _make_mha_kernel(block_h, d_head, acc_into_out)
    scratch_shapes = ([] if acc_into_out
                      else [pltpu.VMEM((block_b * Sq, Hp), jnp.float32)])

    grid = (B // block_b, n_hb)

    # Rough VMEM budget (double-buffered bf16 activations, resident bf16
    # weights (x2 for pipeline buffers), output buffers, optional scratch) ->
    # explicit scoped-VMEM limit with headroom, capped to 3/4 of capacity.
    out_isz = jnp.dtype(out_dtype).itemsize
    est = (2 * 2 * block_b * (Sq * Dq + Skv * Dk + Skv * Dv)
           + 2 * 2 * (Dq * H + Dk * H + Dv * H + H * Hp)
           + 2 * block_b * Sq * Hp * out_isz
           + (0 if acc_into_out else block_b * Sq * Hp * 4))
    vmem_limit = int(min(max(4 * est, 32 << 20), max(32 << 20, (vmem_cap * 3) // 4)))

    # NOTE: on v5e, sweeping pipeline_mode=pl.Buffered(3) on the q/k/v specs can
    # further hide the K/V fetch at batch-block transitions; left at default.
    grid_spec = pltpu.PrefetchScalarGridSpec(
        num_scalar_prefetch=1,
        grid=grid,
        in_specs=[
            pl.BlockSpec((block_b, Sq, Dq), lambda b, h, vl: (b, 0, 0)),
            pl.BlockSpec((block_b, Skv, Dk), lambda b, h, vl: (b, 0, 0)),
            pl.BlockSpec((block_b, Skv, Dv), lambda b, h, vl: (b, 0, 0)),
            pl.BlockSpec((n_hb, Dq, block_h * d_head), lambda b, h, vl: (0, 0, 0)),
            pl.BlockSpec((n_hb, Dk, block_h * d_head), lambda b, h, vl: (0, 0, 0)),
            pl.BlockSpec((n_hb, Dv, block_h * d_head), lambda b, h, vl: (0, 0, 0)),
            pl.BlockSpec((n_hb, block_h * d_head, Hp), lambda b, h, vl: (0, 0, 0)),
        ],
        out_specs=pl.BlockSpec((block_b, Sq, Hp), lambda b, h, vl: (b, 0, 0)),
        scratch_shapes=scratch_shapes,
    )

    out = pl.pallas_call(
        kernel,
        out_shape=jax.ShapeDtypeStruct((B, Sq, Hp), out_dtype),
        grid_spec=grid_spec,
        compiler_params=pltpu.CompilerParams(
            dimension_semantics=("parallel", "arbitrary"),
            vmem_limit_bytes=vmem_limit),
    )(valid_lens, q_in, k_in, v_in, wq_hb, wk_hb, wv_hb, wo_hb)

    if Hp != H:
        out = out[:, :, :H]
    return out


def _reference(queries, keys, values, valid_lens, W_q, W_k, W_v, W_o, num_heads):
    """Pure-JAX f32 reference mirroring the PyTorch module (eval mode)."""
    B, Sq, _ = queries.shape
    Skv = keys.shape[1]
    H = W_q.shape[0]
    d = H // num_heads

    def split(x):  # transpose_qkv
        x = x.reshape(B, x.shape[1], num_heads, d).transpose(0, 2, 1, 3)
        return x.reshape(B * num_heads, x.shape[2], d)

    Q = split(queries @ W_q.T)
    K = split(keys @ W_k.T)
    V = split(values @ W_v.T)
    vl = jnp.repeat(valid_lens, num_heads, axis=0)          # (B*heads,)

    scores = jnp.einsum("bqd,bkd->bqk", Q, K) / math.sqrt(d)
    mask = jnp.arange(Skv)[None, None, :] < vl[:, None, None]
    scores = jnp.where(mask, scores, -1e6)
    attn = jax.nn.softmax(scores, axis=-1)
    out = jnp.einsum("bqk,bkd->bqd", attn, V)                # (B*heads, Sq, d)

    out = out.reshape(B, num_heads, Sq, d).transpose(0, 2, 1, 3).reshape(B, Sq, H)
    return out @ W_o.T


if __name__ == "__main__":
    # Small shapes consistent with the module's forward.
    B, Sq, Skv = 2, 8, 8
    query_size = key_size = value_size = 32
    num_hiddens = 32
    num_heads = 4

    key = jax.random.PRNGKey(0)
    ks = jax.random.split(key, 8)

    queries = jax.random.normal(ks[0], (B, Sq, query_size), dtype=jnp.float32)
    keys_in = jax.random.normal(ks[1], (B, Skv, key_size), dtype=jnp.float32)
    values = jax.random.normal(ks[2], (B, Skv, value_size), dtype=jnp.float32)
    valid_lens = jnp.array([3, 8], dtype=jnp.int32)

    # Deterministic parameter init (torch.nn.Linear layout: (out, in)).
    def init_linear(k, out_f, in_f):
        bound = 1.0 / math.sqrt(in_f)
        return jax.random.uniform(k, (out_f, in_f), jnp.float32, -bound, bound)

    W_q = init_linear(ks[3], num_hiddens, query_size)
    W_k = init_linear(ks[4], num_hiddens, key_size)
    W_v = init_linear(ks[5], num_hiddens, value_size)
    W_o = init_linear(ks[6], num_hiddens, num_hiddens)

    out = multihead_attention(queries, keys_in, values, valid_lens,
                              W_q, W_k, W_v, W_o, num_heads)
    out = jax.block_until_ready(out)

    ref = _reference(queries, keys_in, values, valid_lens,
                     W_q, W_k, W_v, W_o, num_heads)
    assert out.shape == (B, Sq, num_hiddens)
    # bf16 MXU inputs with f32 accumulation -> ~1e-2-level agreement vs f32 ref.
    assert jnp.allclose(out, ref, atol=3e-2, rtol=3e-2), \
        f"max abs diff {jnp.max(jnp.abs(out - ref))}"

    print("KERNEL_OK")
</pallas_src>

<mosaic_0001>
module attributes {stable_mosaic.version = 11 : i64} {
  func.func @kernel(%arg0: i32, %arg1: i32, %arg2: memref<2xi32, #tpu.memory_space<smem>>, %arg3: memref<2x8x32xbf16, #tpu.memory_space<vmem>>, %arg4: memref<2x8x32xbf16, #tpu.memory_space<vmem>>, %arg5: memref<2x8x32xbf16, #tpu.memory_space<vmem>>, %arg6: memref<1x32x32xbf16, #tpu.memory_space<vmem>>, %arg7: memref<1x32x32xbf16, #tpu.memory_space<vmem>>, %arg8: memref<1x32x32xbf16, #tpu.memory_space<vmem>>, %arg9: memref<1x32x128xbf16, #tpu.memory_space<vmem>>, %arg10: memref<2x8x128xf32, #tpu.memory_space<vmem>>) attributes {dimension_semantics = [#tpu.dimension_semantics<parallel>, #tpu.dimension_semantics<arbitrary>], iteration_bounds = array<i64: 1, 1>, scalar_prefetch = 1 : i64, scratch_operands = 0 : i64, tpu.core_type = #tpu.core_type<tc>, window_params = [{transform_indices = @transform_0, window_bounds = array<i64: 2, 8, 32>}, {transform_indices = @transform_1, window_bounds = array<i64: 2, 8, 32>}, {transform_indices = @transform_2, window_bounds = array<i64: 2, 8, 32>}, {pipeline_mode = #tpu.pipeline_mode<synchronous>, transform_indices = @transform_3, window_bounds = array<i64: 1, 32, 32>}, {pipeline_mode = #tpu.pipeline_mode<synchronous>, transform_indices = @transform_4, window_bounds = array<i64: 1, 32, 32>}, {pipeline_mode = #tpu.pipeline_mode<synchronous>, transform_indices = @transform_5, window_bounds = array<i64: 1, 32, 32>}, {pipeline_mode = #tpu.pipeline_mode<synchronous>, transform_indices = @transform_6, window_bounds = array<i64: 1, 32, 128>}, {transform_indices = @transform_7, window_bounds = array<i64: 2, 8, 128>}]} {
    %c2_i32 = arith.constant 2 : i32
    %0 = arith.muli %arg0, %c2_i32 : i32
    %c0 = arith.constant 0 : index
    %c0_0 = arith.constant 0 : index
    %c0_1 = arith.constant 0 : index
    %1 = vector.load %arg3[%c0, %c0_0, %c0_1] : memref<2x8x32xbf16, #tpu.memory_space<vmem>>, vector<2x8x32xbf16>
    %2 = vector.shape_cast %1 : vector<2x8x32xbf16> to vector<16x32xbf16>
    %c0_2 = arith.constant 0 : index
    %c0_3 = arith.constant 0 : index
    %c0_4 = arith.constant 0 : index
    %3 = vector.load %arg4[%c0_2, %c0_3, %c0_4] : memref<2x8x32xbf16, #tpu.memory_space<vmem>>, vector<2x8x32xbf16>
    %4 = vector.shape_cast %3 : vector<2x8x32xbf16> to vector<16x32xbf16>
    %c0_5 = arith.constant 0 : index
    %c0_6 = arith.constant 0 : index
    %c0_7 = arith.constant 0 : index
    %5 = vector.load %arg5[%c0_5, %c0_6, %c0_7] : memref<2x8x32xbf16, #tpu.memory_space<vmem>>, vector<2x8x32xbf16>
    %6 = vector.shape_cast %5 : vector<2x8x32xbf16> to vector<16x32xbf16>
    %7 = arith.index_cast %arg1 : i32 to index
    %c0_8 = arith.constant 0 : index
    %c0_9 = arith.constant 0 : index
    %8 = vector.load %arg6[%7, %c0_8, %c0_9] : memref<1x32x32xbf16, #tpu.memory_space<vmem>>, vector<1x32x32xbf16>
    %9 = vector.shape_cast %8 : vector<1x32x32xbf16> to vector<32x32xbf16>
    %10 = arith.index_cast %arg1 : i32 to index
    %c0_10 = arith.constant 0 : index
    %c0_11 = arith.constant 0 : index
    %11 = vector.load %arg7[%10, %c0_10, %c0_11] : memref<1x32x32xbf16, #tpu.memory_space<vmem>>, vector<1x32x32xbf16>
    %12 = vector.shape_cast %11 : vector<1x32x32xbf16> to vector<32x32xbf16>
    %13 = arith.index_cast %arg1 : i32 to index
    %c0_12 = arith.constant 0 : index
    %c0_13 = arith.constant 0 : index
    %14 = vector.load %arg8[%13, %c0_12, %c0_13] : memref<1x32x32xbf16, #tpu.memory_space<vmem>>, vector<1x32x32xbf16>
    %15 = vector.shape_cast %14 : vector<1x32x32xbf16> to vector<32x32xbf16>
    %16 = arith.index_cast %arg1 : i32 to index
    %c0_14 = arith.constant 0 : index
    %c0_15 = arith.constant 0 : index
    %17 = vector.load %arg9[%16, %c0_14, %c0_15] : memref<1x32x128xbf16, #tpu.memory_space<vmem>>, vector<1x32x128xbf16>
    %18 = vector.shape_cast %17 : vector<1x32x128xbf16> to vector<32x128xbf16>
    %cst = arith.constant dense<0.000000e+00> : vector<16x32xf32>
    %19 = tpu.matmul %2, %9, %cst {dimension_numbers = #tpu.dot_dimension_numbers<[1], [0], [0], [1], [0, 0, 1, 1], [], []>} : vector<16x32xbf16>, vector<32x32xbf16>, vector<16x32xf32> -> vector<16x32xf32>
    %cst_16 = arith.constant dense<0.000000e+00> : vector<16x32xf32>
    %20 = tpu.matmul %4, %12, %cst_16 {dimension_numbers = #tpu.dot_dimension_numbers<[1], [0], [0], [1], [0, 0, 1, 1], [], []>} : vector<16x32xbf16>, vector<32x32xbf16>, vector<16x32xf32> -> vector<16x32xf32>
    %cst_17 = arith.constant dense<0.000000e+00> : vector<16x32xf32>
    %21 = tpu.matmul %6, %15, %cst_17 {dimension_numbers = #tpu.dot_dimension_numbers<[1], [0], [0], [1], [0, 0, 1, 1], [], []>} : vector<16x32xbf16>, vector<32x32xbf16>, vector<16x32xf32> -> vector<16x32xf32>
    %22 = tpu.iota {dimensions = array<i32: 2>} : vector<2x1x8xi32>
    %23 = tpu.iota {dimensions = array<i32: 0>} : vector<2x1x8xi32>
    %c0_i32 = arith.constant 0 : i32
    %24 = vector.broadcast %c0_i32 : i32 to vector<2x1x8xi32>
    %c0_i32_18 = arith.constant 0 : i32
    %25 = vector.broadcast %c0_i32_18 : i32 to vector<2x1x8xi32>
    %26 = arith.cmpi eq, %23, %25 : vector<2x1x8xi32>
    %c0_i32_19 = arith.constant 0 : i32
    %27 = arith.addi %0, %c0_i32_19 : i32
    %28 = arith.index_cast %27 : i32 to index
    %29 = memref.load %arg2[%28] : memref<2xi32, #tpu.memory_space<smem>>
    %30 = vector.broadcast %29 : i32 to vector<2x1x8xi32>
    %31 = arith.select %26, %30, %24 : vector<2x1x8xi1>, vector<2x1x8xi32>
    %c1_i32 = arith.constant 1 : i32
    %32 = vector.broadcast %c1_i32 : i32 to vector<2x1x8xi32>
    %33 = arith.cmpi eq, %23, %32 : vector<2x1x8xi32>
    %c1_i32_20 = arith.constant 1 : i32
    %34 = arith.addi %0, %c1_i32_20 : i32
    %35 = arith.index_cast %34 : i32 to index
    %36 = memref.load %arg2[%35] : memref<2xi32, #tpu.memory_space<smem>>
    %37 = vector.broadcast %36 : i32 to vector<2x1x8xi32>
    %38 = arith.select %33, %37, %31 : vector<2x1x8xi1>, vector<2x1x8xi32>
    %39 = arith.cmpi slt, %22, %38 : vector<2x1x8xi32>
    %40 = vector.extract_strided_slice %19 {offsets = [0, 0], sizes = [16, 8], strides = [1, 1]} : vector<16x32xf32> to vector<16x8xf32>
    %41 = vector.shape_cast %40 : vector<16x8xf32> to vector<2x8x8xf32>
    %42 = arith.truncf %41 : vector<2x8x8xf32> to vector<2x8x8xbf16>
    %43 = vector.extract_strided_slice %20 {offsets = [0, 0], sizes = [16, 8], strides = [1, 1]} : vector<16x32xf32> to vector<16x8xf32>
    %44 = vector.shape_cast %43 : vector<16x8xf32> to vector<2x8x8xf32>
    %45 = arith.truncf %44 : vector<2x8x8xf32> to vector<2x8x8xbf16>
    %46 = vector.extract_strided_slice %21 {offsets = [0, 0], sizes = [16, 8], strides = [1, 1]} : vector<16x32xf32> to vector<16x8xf32>
    %47 = vector.shape_cast %46 : vector<16x8xf32> to vector<2x8x8xf32>
    %48 = arith.truncf %47 : vector<2x8x8xf32> to vector<2x8x8xbf16>
    "tpu.trace_start"() <{level = 10 : i32, message = "bqd,bkd->bqk"}> : () -> ()
    %cst_21 = arith.constant dense<0.000000e+00> : vector<2x8x8xf32>
    %49 = tpu.matmul %42, %45, %cst_21 {dimension_numbers = #tpu.dot_dimension_numbers<[2], [2], [1], [1], [0, 0, 0, 1, 1, 1], [0], [0]>} : vector<2x8x8xbf16>, vector<2x8x8xbf16>, vector<2x8x8xf32> -> vector<2x8x8xf32>
    %cst_22 = arith.constant -1.000000e+06 : f32
    "tpu.trace_stop"() : () -> ()
    %50 = vector.shape_cast %39 : vector<2x1x8xi1> to vector<2x1x8xi1>
    %51 = vector.broadcast %50 : vector<2x1x8xi1> to vector<2x8x8xi1>
    %52 = vector.broadcast %cst_22 : f32 to vector<2x8x8xf32>
    %53 = arith.select %51, %49, %52 : vector<2x8x8xi1>, vector<2x8x8xf32>
    %cst_23 = arith.constant dense<0xFF800000> : vector<2x8xf32>
    %54 = vector.multi_reduction <maximumf>, %53, %cst_23 [2] : vector<2x8x8xf32> to vector<2x8xf32>
    %55 = vector.shape_cast %54 : vector<2x8xf32> to vector<2x8x1xf32>
    %56 = vector.broadcast %55 : vector<2x8x1xf32> to vector<2x8x8xf32>
    %57 = arith.subf %53, %56 : vector<2x8x8xf32>
    %58 = math.exp %57 : vector<2x8x8xf32>
    %cst_24 = arith.constant dense<0.000000e+00> : vector<2x8xf32>
    %59 = vector.multi_reduction <add>, %58, %cst_24 [2] : vector<2x8x8xf32> to vector<2x8xf32>
    %60 = vector.shape_cast %59 : vector<2x8xf32> to vector<2x8x1xf32>
    %61 = tpu.reciprocal %60 {approx = true} : vector<2x8x1xf32> -> vector<2x8x1xf32>
    %62 = vector.broadcast %61 : vector<2x8x1xf32> to vector<2x8x8xf32>
    %63 = arith.mulf %58, %62 : vector<2x8x8xf32>
    %64 = arith.truncf %63 : vector<2x8x8xf32> to vector<2x8x8xbf16>
    "tpu.trace_start"() <{level = 10 : i32, message = "bqk,bkd->bqd"}> : () -> ()
    %cst_25 = arith.constant dense<0.000000e+00> : vector<2x8x8xf32>
    %65 = tpu.matmul %64, %48, %cst_25 {dimension_numbers = #tpu.dot_dimension_numbers<[2], [1], [1], [2], [0, 0, 0, 1, 1, 2], [0], [0]>} : vector<2x8x8xbf16>, vector<2x8x8xbf16>, vector<2x8x8xf32> -> vector<2x8x8xf32>
    "tpu.trace_stop"() : () -> ()
    %66 = vector.shape_cast %65 : vector<2x8x8xf32> to vector<16x8xf32>
    %67 = vector.extract_strided_slice %19 {offsets = [0, 8], sizes = [16, 8], strides = [1, 1]} : vector<16x32xf32> to vector<16x8xf32>
    %68 = vector.shape_cast %67 : vector<16x8xf32> to vector<2x8x8xf32>
    %69 = arith.truncf %68 : vector<2x8x8xf32> to vector<2x8x8xbf16>
    %70 = vector.extract_strided_slice %20 {offsets = [0, 8], sizes = [16, 8], strides = [1, 1]} : vector<16x32xf32> to vector<16x8xf32>
    %71 = vector.shape_cast %70 : vector<16x8xf32> to vector<2x8x8xf32>
    %72 = arith.truncf %71 : vector<2x8x8xf32> to vector<2x8x8xbf16>
    %73 = vector.extract_strided_slice %21 {offsets = [0, 8], sizes = [16, 8], strides = [1, 1]} : vector<16x32xf32> to vector<16x8xf32>
    %74 = vector.shape_cast %73 : vector<16x8xf32> to vector<2x8x8xf32>
    %75 = arith.truncf %74 : vector<2x8x8xf32> to vector<2x8x8xbf16>
    "tpu.trace_start"() <{level = 10 : i32, message = "bqd,bkd->bqk"}> : () -> ()
    %cst_26 = arith.constant dense<0.000000e+00> : vector<2x8x8xf32>
    %76 = tpu.matmul %69, %72, %cst_26 {dimension_numbers = #tpu.dot_dimension_numbers<[2], [2], [1], [1], [0, 0, 0, 1, 1, 1], [0], [0]>} : vector<2x8x8xbf16>, vector<2x8x8xbf16>, vector<2x8x8xf32> -> vector<2x8x8xf32>
    %cst_27 = arith.constant -1.000000e+06 : f32
    "tpu.trace_stop"() : () -> ()
    %77 = vector.shape_cast %39 : vector<2x1x8xi1> to vector<2x1x8xi1>
    %78 = vector.broadcast %77 : vector<2x1x8xi1> to vector<2x8x8xi1>
    %79 = vector.broadcast %cst_27 : f32 to vector<2x8x8xf32>
    %80 = arith.select %78, %76, %79 : vector<2x8x8xi1>, vector<2x8x8xf32>
    %cst_28 = arith.constant dense<0xFF800000> : vector<2x8xf32>
    %81 = vector.multi_reduction <maximumf>, %80, %cst_28 [2] : vector<2x8x8xf32> to vector<2x8xf32>
    %82 = vector.shape_cast %81 : vector<2x8xf32> to vector<2x8x1xf32>
    %83 = vector.broadcast %82 : vector<2x8x1xf32> to vector<2x8x8xf32>
    %84 = arith.subf %80, %83 : vector<2x8x8xf32>
    %85 = math.exp %84 : vector<2x8x8xf32>
    %cst_29 = arith.constant dense<0.000000e+00> : vector<2x8xf32>
    %86 = vector.multi_reduction <add>, %85, %cst_29 [2] : vector<2x8x8xf32> to vector<2x8xf32>
    %87 = vector.shape_cast %86 : vector<2x8xf32> to vector<2x8x1xf32>
    %88 = tpu.reciprocal %87 {approx = true} : vector<2x8x1xf32> -> vector<2x8x1xf32>
    %89 = vector.broadcast %88 : vector<2x8x1xf32> to vector<2x8x8xf32>
    %90 = arith.mulf %85, %89 : vector<2x8x8xf32>
    %91 = arith.truncf %90 : vector<2x8x8xf32> to vector<2x8x8xbf16>
    "tpu.trace_start"() <{level = 10 : i32, message = "bqk,bkd->bqd"}> : () -> ()
    %cst_30 = arith.constant dense<0.000000e+00> : vector<2x8x8xf32>
    %92 = tpu.matmul %91, %75, %cst_30 {dimension_numbers = #tpu.dot_dimension_numbers<[2], [1], [1], [2], [0, 0, 0, 1, 1, 2], [0], [0]>} : vector<2x8x8xbf16>, vector<2x8x8xbf16>, vector<2x8x8xf32> -> vector<2x8x8xf32>
    "tpu.trace_stop"() : () -> ()
    %93 = vector.shape_cast %92 : vector<2x8x8xf32> to vector<16x8xf32>
    %94 = vector.extract_strided_slice %19 {offsets = [0, 16], sizes = [16, 8], strides = [1, 1]} : vector<16x32xf32> to vector<16x8xf32>
    %95 = vector.shape_cast %94 : vector<16x8xf32> to vector<2x8x8xf32>
    %96 = arith.truncf %95 : vector<2x8x8xf32> to vector<2x8x8xbf16>
    %97 = vector.extract_strided_slice %20 {offsets = [0, 16], sizes = [16, 8], strides = [1, 1]} : vector<16x32xf32> to vector<16x8xf32>
    %98 = vector.shape_cast %97 : vector<16x8xf32> to vector<2x8x8xf32>
    %99 = arith.truncf %98 : vector<2x8x8xf32> to vector<2x8x8xbf16>
    %100 = vector.extract_strided_slice %21 {offsets = [0, 16], sizes = [16, 8], strides = [1, 1]} : vector<16x32xf32> to vector<16x8xf32>
    %101 = vector.shape_cast %100 : vector<16x8xf32> to vector<2x8x8xf32>
    %102 = arith.truncf %101 : vector<2x8x8xf32> to vector<2x8x8xbf16>
    "tpu.trace_start"() <{level = 10 : i32, message = "bqd,bkd->bqk"}> : () -> ()
    %cst_31 = arith.constant dense<0.000000e+00> : vector<2x8x8xf32>
    %103 = tpu.matmul %96, %99, %cst_31 {dimension_numbers = #tpu.dot_dimension_numbers<[2], [2], [1], [1], [0, 0, 0, 1, 1, 1], [0], [0]>} : vector<2x8x8xbf16>, vector<2x8x8xbf16>, vector<2x8x8xf32> -> vector<2x8x8xf32>
    %cst_32 = arith.constant -1.000000e+06 : f32
    "tpu.trace_stop"() : () -> ()
    %104 = vector.shape_cast %39 : vector<2x1x8xi1> to vector<2x1x8xi1>
    %105 = vector.broadcast %104 : vector<2x1x8xi1> to vector<2x8x8xi1>
    %106 = vector.broadcast %cst_32 : f32 to vector<2x8x8xf32>
    %107 = arith.select %105, %103, %106 : vector<2x8x8xi1>, vector<2x8x8xf32>
    %cst_33 = arith.constant dense<0xFF800000> : vector<2x8xf32>
    %108 = vector.multi_reduction <maximumf>, %107, %cst_33 [2] : vector<2x8x8xf32> to vector<2x8xf32>
    %109 = vector.shape_cast %108 : vector<2x8xf32> to vector<2x8x1xf32>
    %110 = vector.broadcast %109 : vector<2x8x1xf32> to vector<2x8x8xf32>
    %111 = arith.subf %107, %110 : vector<2x8x8xf32>
    %112 = math.exp %111 : vector<2x8x8xf32>
    %cst_34 = arith.constant dense<0.000000e+00> : vector<2x8xf32>
    %113 = vector.multi_reduction <add>, %112, %cst_34 [2] : vector<2x8x8xf32> to vector<2x8xf32>
    %114 = vector.shape_cast %113 : vector<2x8xf32> to vector<2x8x1xf32>
    %115 = tpu.reciprocal %114 {approx = true} : vector<2x8x1xf32> -> vector<2x8x1xf32>
    %116 = vector.broadcast %115 : vector<2x8x1xf32> to vector<2x8x8xf32>
    %117 = arith.mulf %112, %116 : vector<2x8x8xf32>
    %118 = arith.truncf %117 : vector<2x8x8xf32> to vector<2x8x8xbf16>
    "tpu.trace_start"() <{level = 10 : i32, message = "bqk,bkd->bqd"}> : () -> ()
    %cst_35 = arith.constant dense<0.000000e+00> : vector<2x8x8xf32>
    %119 = tpu.matmul %118, %102, %cst_35 {dimension_numbers = #tpu.dot_dimension_numbers<[2], [1], [1], [2], [0, 0, 0, 1, 1, 2], [0], [0]>} : vector<2x8x8xbf16>, vector<2x8x8xbf16>, vector<2x8x8xf32> -> vector<2x8x8xf32>
    "tpu.trace_stop"() : () -> ()
    %120 = vector.shape_cast %119 : vector<2x8x8xf32> to vector<16x8xf32>
    %121 = vector.extract_strided_slice %19 {offsets = [0, 24], sizes = [16, 8], strides = [1, 1]} : vector<16x32xf32> to vector<16x8xf32>
    %122 = vector.shape_cast %121 : vector<16x8xf32> to vector<2x8x8xf32>
    %123 = arith.truncf %122 : vector<2x8x8xf32> to vector<2x8x8xbf16>
    %124 = vector.extract_strided_slice %20 {offsets = [0, 24], sizes = [16, 8], strides = [1, 1]} : vector<16x32xf32> to vector<16x8xf32>
    %125 = vector.shape_cast %124 : vector<16x8xf32> to vector<2x8x8xf32>
    %126 = arith.truncf %125 : vector<2x8x8xf32> to vector<2x8x8xbf16>
    %127 = vector.extract_strided_slice %21 {offsets = [0, 24], sizes = [16, 8], strides = [1, 1]} : vector<16x32xf32> to vector<16x8xf32>
    %128 = vector.shape_cast %127 : vector<16x8xf32> to vector<2x8x8xf32>
    %129 = arith.truncf %128 : vector<2x8x8xf32> to vector<2x8x8xbf16>
    "tpu.trace_start"() <{level = 10 : i32, message = "bqd,bkd->bqk"}> : () -> ()
    %cst_36 = arith.constant dense<0.000000e+00> : vector<2x8x8xf32>
    %130 = tpu.matmul %123, %126, %cst_36 {dimension_numbers = #tpu.dot_dimension_numbers<[2], [2], [1], [1], [0, 0, 0, 1, 1, 1], [0], [0]>} : vector<2x8x8xbf16>, vector<2x8x8xbf16>, vector<2x8x8xf32> -> vector<2x8x8xf32>
    %cst_37 = arith.constant -1.000000e+06 : f32
    "tpu.trace_stop"() : () -> ()
    %131 = vector.shape_cast %39 : vector<2x1x8xi1> to vector<2x1x8xi1>
    %132 = vector.broadcast %131 : vector<2x1x8xi1> to vector<2x8x8xi1>
    %133 = vector.broadcast %cst_37 : f32 to vector<2x8x8xf32>
    %134 = arith.select %132, %130, %133 : vector<2x8x8xi1>, vector<2x8x8xf32>
    %cst_38 = arith.constant dense<0xFF800000> : vector<2x8xf32>
    %135 = vector.multi_reduction <maximumf>, %134, %cst_38 [2] : vector<2x8x8xf32> to vector<2x8xf32>
    %136 = vector.shape_cast %135 : vector<2x8xf32> to vector<2x8x1xf32>
    %137 = vector.broadcast %136 : vector<2x8x1xf32> to vector<2x8x8xf32>
    %138 = arith.subf %134, %137 : vector<2x8x8xf32>
    %139 = math.exp %138 : vector<2x8x8xf32>
    %cst_39 = arith.constant dense<0.000000e+00> : vector<2x8xf32>
    %140 = vector.multi_reduction <add>, %139, %cst_39 [2] : vector<2x8x8xf32> to vector<2x8xf32>
    %141 = vector.shape_cast %140 : vector<2x8xf32> to vector<2x8x1xf32>
    %142 = tpu.reciprocal %141 {approx = true} : vector<2x8x1xf32> -> vector<2x8x1xf32>
    %143 = vector.broadcast %142 : vector<2x8x1xf32> to vector<2x8x8xf32>
    %144 = arith.mulf %139, %143 : vector<2x8x8xf32>
    %145 = arith.truncf %144 : vector<2x8x8xf32> to vector<2x8x8xbf16>
    "tpu.trace_start"() <{level = 10 : i32, message = "bqk,bkd->bqd"}> : () -> ()
    %cst_40 = arith.constant dense<0.000000e+00> : vector<2x8x8xf32>
    %146 = tpu.matmul %145, %129, %cst_40 {dimension_numbers = #tpu.dot_dimension_numbers<[2], [1], [1], [2], [0, 0, 0, 1, 1, 2], [0], [0]>} : vector<2x8x8xbf16>, vector<2x8x8xbf16>, vector<2x8x8xf32> -> vector<2x8x8xf32>
    "tpu.trace_stop"() : () -> ()
    %147 = vector.shape_cast %146 : vector<2x8x8xf32> to vector<16x8xf32>
    %148 = tpu.concatenate %66, %93, %120, %147 in 1 : vector<16x8xf32>, vector<16x8xf32>, vector<16x8xf32>, vector<16x8xf32> -> vector<16x32xf32>
    %149 = arith.truncf %148 : vector<16x32xf32> to vector<16x32xbf16>
    %cst_41 = arith.constant dense<0.000000e+00> : vector<16x128xf32>
    %150 = tpu.matmul %149, %18, %cst_41 {dimension_numbers = #tpu.dot_dimension_numbers<[1], [0], [0], [1], [0, 0, 1, 1], [], []>} : vector<16x32xbf16>, vector<32x128xbf16>, vector<16x128xf32> -> vector<16x128xf32>
    %c0_i32_42 = arith.constant 0 : i32
    %151 = arith.cmpi eq, %arg1, %c0_i32_42 : i32
    %152 = arith.extui %151 : i1 to i32
    %c0_i32_43 = arith.constant 0 : i32
    %153 = arith.cmpi ne, %152, %c0_i32_43 : i32
    scf.if %153 {
      %cst_50 = arith.constant 0.000000e+00 : f32
      %158 = vector.broadcast %cst_50 : f32 to vector<2x8x128xf32>
      %c0_51 = arith.constant 0 : index
      %c0_52 = arith.constant 0 : index
      %c0_53 = arith.constant 0 : index
      %159 = vector.load %arg10[%c0_51, %c0_52, %c0_53] : memref<2x8x128xf32, #tpu.memory_space<vmem>>, vector<2x8x128xf32>
      tpu.vector_store %arg10[%c0_51, %c0_52, %c0_53], %158 {strides = array<i32>} : memref<2x8x128xf32, #tpu.memory_space<vmem>>, vector<2x8x128xf32>,
    } else {
    }
    %c0_44 = arith.constant 0 : index
    %c0_45 = arith.constant 0 : index
    %c0_46 = arith.constant 0 : index
    %154 = vector.load %arg10[%c0_44, %c0_45, %c0_46] : memref<2x8x128xf32, #tpu.memory_space<vmem>>, vector<2x8x128xf32>
    %155 = vector.shape_cast %150 : vector<16x128xf32> to vector<2x8x128xf32>
    %156 = arith.addf %154, %155 : vector<2x8x128xf32>
    %c0_47 = arith.constant 0 : index
    %c0_48 = arith.constant 0 : index
    %c0_49 = arith.constant 0 : index
    %157 = vector.load %arg10[%c0_47, %c0_48, %c0_49] : memref<2x8x128xf32, #tpu.memory_space<vmem>>, vector<2x8x128xf32>
    tpu.vector_store %arg10[%c0_47, %c0_48, %c0_49], %156 {strides = array<i32>} : memref<2x8x128xf32, #tpu.memory_space<vmem>>, vector<2x8x128xf32>,
    return
  }
  func.func @transform_0(%arg0: i32, %arg1: i32, %arg2: memref<2xi32, #tpu.memory_space<smem>>) -> (i32, i32, i32) {
    %c0_i32 = arith.constant 0 : i32
    %c0_i32_0 = arith.constant 0 : i32
    %c0_i32_1 = arith.constant 0 : i32
    return %arg0, %c0_i32, %c0_i32_0 : i32, i32, i32
  }
  func.func @transform_1(%arg0: i32, %arg1: i32, %arg2: memref<2xi32, #tpu.memory_space<smem>>) -> (i32, i32, i32) {
    %c0_i32 = arith.constant 0 : i32
    %c0_i32_0 = arith.constant 0 : i32
    %c0_i32_1 = arith.constant 0 : i32
    return %arg0, %c0_i32, %c0_i32_0 : i32, i32, i32
  }
  func.func @transform_2(%arg0: i32, %arg1: i32, %arg2: memref<2xi32, #tpu.memory_space<smem>>) -> (i32, i32, i32) {
    %c0_i32 = arith.constant 0 : i32
    %c0_i32_0 = arith.constant 0 : i32
    %c0_i32_1 = arith.constant 0 : i32
    return %arg0, %c0_i32, %c0_i32_0 : i32, i32, i32
  }
  func.func @transform_3(%arg0: i32, %arg1: i32, %arg2: memref<2xi32, #tpu.memory_space<smem>>) -> (i32, i32, i32) {
    %c0_i32 = arith.constant 0 : i32
    %c0_i32_0 = arith.constant 0 : i32
    %c0_i32_1 = arith.constant 0 : i32
    %c0_i32_2 = arith.constant 0 : i32
    return %c0_i32, %c0_i32_0, %c0_i32_1 : i32, i32, i32
  }
  func.func @transform_4(%arg0: i32, %arg1: i32, %arg2: memref<2xi32, #tpu.memory_space<smem>>) -> (i32, i32, i32) {
    %c0_i32 = arith.constant 0 : i32
    %c0_i32_0 = arith.constant 0 : i32
    %c0_i32_1 = arith.constant 0 : i32
    %c0_i32_2 = arith.constant 0 : i32
    return %c0_i32, %c0_i32_0, %c0_i32_1 : i32, i32, i32
  }
  func.func @transform_5(%arg0: i32, %arg1: i32, %arg2: memref<2xi32, #tpu.memory_space<smem>>) -> (i32, i32, i32) {
    %c0_i32 = arith.constant 0 : i32
    %c0_i32_0 = arith.constant 0 : i32
    %c0_i32_1 = arith.constant 0 : i32
    %c0_i32_2 = arith.constant 0 : i32
    return %c0_i32, %c0_i32_0, %c0_i32_1 : i32, i32, i32
  }
  func.func @transform_6(%arg0: i32, %arg1: i32, %arg2: memref<2xi32, #tpu.memory_space<smem>>) -> (i32, i32, i32) {
    %c0_i32 = arith.constant 0 : i32
    %c0_i32_0 = arith.constant 0 : i32
    %c0_i32_1 = arith.constant 0 : i32
    %c0_i32_2 = arith.constant 0 : i32
    return %c0_i32, %c0_i32_0, %c0_i32_1 : i32, i32, i32
  }
  func.func @transform_7(%arg0: i32, %arg1: i32, %arg2: memref<2xi32, #tpu.memory_space<smem>>) -> (i32, i32, i32) {
    %c0_i32 = arith.constant 0 : i32
    %c0_i32_0 = arith.constant 0 : i32
    %c0_i32_1 = arith.constant 0 : i32
    return %arg0, %c0_i32, %c0_i32_0 : i32, i32, i32
  }
}

</mosaic_0001>

<llo_original>
// kernel: tpu_custom_call.1
$region0: #{tpu_custom_call.1}
  #allocation0 [shape = 'u32[]', space=smem, size = 0x4, offset = 0x4, fixed_abs, tag = 'smem constant byte address 0x4 - core index']
  #allocation1 [shape = 'u32[144,128]{1,0:T(1,128)}', space=vmem, size = 0x12000, scoped, tag = 'internal scratch']
  #allocation2 [shape = 's32[1]{0}', space=sflag, size = 0x4, scoped, tag = 'scoped memory for tpu_custom_call.1']
  #allocation3 [shape = 'u8[512]{0}', space=smem, size = 0x200, scoped, tag = 'prefetched SMEM operand 0']
  %s0 = inlined_call_operand.hbm [shape: s32[2], index: 0, kind: input, shape index: {}]
  %s1 = inlined_call_operand.hbm [shape: bf16[2,8,32], index: 1, kind: input, shape index: {}]
  %s2 = inlined_call_operand.hbm [shape: bf16[2,8,32], index: 2, kind: input, shape index: {}]
  %s3 = inlined_call_operand.hbm [shape: bf16[2,8,32], index: 3, kind: input, shape index: {}]
  %s4 = inlined_call_operand.hbm [shape: bf16[1,32,32], index: 4, kind: input, shape index: {}]
  %s5 = inlined_call_operand.vmem [shape: bf16[1,32,32], index: 5, kind: input, shape index: {}]
  %s6 = inlined_call_operand.hbm [shape: bf16[1,32,32], index: 6, kind: input, shape index: {}]
  %s7 = inlined_call_operand.hbm [shape: bf16[1,32,128], index: 7, kind: input, shape index: {}]
  %s8 = inlined_call_operand.hbm [shape: f32[2,8,128], index: 8, kind: output, shape index: {}]
  %s9 = sld [smem:[#allocation0]]
  $region66: #{tpu_custom_call.1} parent=0
    _
  %s11 = ssub.s32 1, %s9
  %s12 = scalar_select 0, %s11, %s9
  %14 = dma.hbm_to_smem %s0, 16, [#allocation3], [#allocation2]
  %15 = dma.done [#allocation2], 16
  %16 = sfence
  $region1: #{tpu_custom_call.1} parent=0
    #allocation4 [shape = 'u8[4096]{0}', space=vmem, size = 0x1000, scoped, tag = 'input window, operand 1, single buffered']
    #allocation5 [shape = 's32[1]{0}', space=sflag, size = 0x4, scoped, tag = 'scoped memory for tpu_custom_call.1']
    #allocation6 [shape = 's32[1]{0}', space=sflag, size = 0x4, scoped, tag = 'scoped memory for tpu_custom_call.1']
    #allocation7 [shape = 'u8[4096]{0}', space=vmem, size = 0x1000, scoped, tag = 'input window, operand 2, single buffered']
    #allocation8 [shape = 's32[1]{0}', space=sflag, size = 0x4, scoped, tag = 'scoped memory for tpu_custom_call.1']
    #allocation9 [shape = 'u8[4096]{0}', space=vmem, size = 0x1000, scoped, tag = 'input window, operand 3, single buffered']
    #allocation10 [shape = 'u8[8192]{0}', space=vmem, size = 0x2000, scoped, tag = 'input window, operand 4, single buffered']
    #allocation11 [shape = 's32[1]{0}', space=sflag, size = 0x4, scoped, tag = 'scoped memory for tpu_custom_call.1']
    #allocation12 [shape = 'u8[8192]{0}', space=vmem, size = 0x2000, scoped, tag = 'input window, operand 6, single buffered']
    #allocation13 [shape = 'u8[8192]{0}', space=vmem, size = 0x2000, scoped, tag = 'input window, operand 7, single buffered']
    #allocation14 [shape = 's32[1]{0}', space=sflag, size = 0x4, scoped, tag = 'scoped memory for tpu_custom_call.1']
    #allocation15 [shape = 'u8[8192]{0}', space=vmem, size = 0x2000, scoped, tag = 'output window, operand 0, single buffered']
    %17 = vsyncpa [#allocation5], 0
    %18 = vsyncpa [#allocation8], 0
    %19 = vsyncpa [#allocation11], 0
    %20 = vsyncpa [#allocation14], 0
    %21 = vsyncpa [#allocation6], 0
    // Predicated region
    $region2: #{tpu_custom_call.1} parent=1 // pred_check
      _
    $region3: #{tpu_custom_call.1} parent=1 // pred_check_branch
      %23 = sbr.rel (0) target = $region5
    $region4: #{tpu_custom_call.1} parent=1 // pred_region
      %s25 = ssub.s32 128, 128
      %26 = vsyncadd [#allocation5], %s25
      %s27 = sshll.u32 [#allocation4], 4
      %s28 = int_to_ptr.vmem [resolvable:$true] %s27
      %33 = dma.hbm_to_vmem [thread:$0]  %s1, 128, %s28, [#allocation5], 64, 64, 4
    $region5: #{tpu_custom_call.1} parent=1 // pred_fallthru
      _
    // Predicated region
    $region6: #{tpu_custom_call.1} parent=1 // pred_check
      _
    $region7: #{tpu_custom_call.1} parent=1 // pred_check_branch
      %35 = sbr.rel (0) target = $region9
    $region8: #{tpu_custom_call.1} parent=1 // pred_region
      %s37 = ssub.s32 128, 128
      %38 = vsyncadd [#allocation8], %s37
      %s39 = sshll.u32 [#allocation7], 4
      %s40 = int_to_ptr.vmem [resolvable:$true] %s39
      %45 = dma.hbm_to_vmem [thread:$0]  %s2, 128, %s40, [#allocation8], 64, 64, 4
    $region9: #{tpu_custom_call.1} parent=1 // pred_fallthru
      _
    // Predicated region
    $region10: #{tpu_custom_call.1} parent=1 // pred_check
      _
    $region11: #{tpu_custom_call.1} parent=1 // pred_check_branch
      %47 = sbr.rel (0) target = $region13
    $region12: #{tpu_custom_call.1} parent=1 // pred_region
      %s49 = ssub.s32 128, 128
      %50 = vsyncadd [#allocation8], %s49
      %s51 = sshll.u32 [#allocation9], 4
      %s52 = int_to_ptr.vmem [resolvable:$true] %s51
      %57 = dma.hbm_to_vmem [thread:$0]  %s3, 128, %s52, [#allocation8], 64, 64, 4
    $region13: #{tpu_custom_call.1} parent=1 // pred_fallthru
      _
    // Predicated region
    $region14: #{tpu_custom_call.1} parent=1 // pred_check
      _
    $region15: #{tpu_custom_call.1} parent=1 // pred_check_branch
      %59 = sbr.rel (0) target = $region17
    $region16: #{tpu_custom_call.1} parent=1 // pred_region
      %s61 = ssub.s32 256, 256
      %62 = vsyncadd [#allocation11], %s61
      %s63 = sshll.u32 [#allocation10], 4
      %s64 = int_to_ptr.vmem [resolvable:$true] %s63
      %69 = dma.hbm_to_vmem [thread:$0]  %s4, 256, %s64, [#allocation11], 64, 64, 4
    $region17: #{tpu_custom_call.1} parent=1 // pred_fallthru
      _
    // Predicated region
    $region18: #{tpu_custom_call.1} parent=1 // pred_check
      _
    $region19: #{tpu_custom_call.1} parent=1 // pred_check_branch
      %71 = sbr.rel (0) target = $region21
    $region20: #{tpu_custom_call.1} parent=1 // pred_region
      _
    $region21: #{tpu_custom_call.1} parent=1 // pred_fallthru
      _
    // Predicated region
    $region22: #{tpu_custom_call.1} parent=1 // pred_check
      _
    $region23: #{tpu_custom_call.1} parent=1 // pred_check_branch
      %73 = sbr.rel (0) target = $region25
    $region24: #{tpu_custom_call.1} parent=1 // pred_region
      %s75 = ssub.s32 256, 256
      %76 = vsyncadd [#allocation11], %s75
      %s77 = sshll.u32 [#allocation12], 4
      %s78 = int_to_ptr.vmem [resolvable:$true] %s77
      %83 = dma.hbm_to_vmem [thread:$0]  %s6, 256, %s78, [#allocation11], 64, 64, 4
    $region25: #{tpu_custom_call.1} parent=1 // pred_fallthru
      _
    // Predicated region
    $region26: #{tpu_custom_call.1} parent=1 // pred_check
      _
    $region27: #{tpu_custom_call.1} parent=1 // pred_check_branch
      %85 = sbr.rel (0) target = $region29
    $region28: #{tpu_custom_call.1} parent=1 // pred_region
      %s87 = ssub.s32 256, 256
      %88 = vsyncadd [#allocation14], %s87
      %s89 = sshll.u32 [#allocation13], 4
      %s90 = int_to_ptr.vmem [resolvable:$true] %s89
      %95 = dma.hbm_to_vmem [thread:$0]  %s7, 256, %s90, [#allocation14], 64, 64, 4
    $region29: #{tpu_custom_call.1} parent=1 // pred_fallthru
      _
    // Predicated region
    $region30: #{tpu_custom_call.1} parent=1 // pred_check
      _
    $region31: #{tpu_custom_call.1} parent=1 // pred_check_branch
      %97 = sbr.rel (0) target = $region33
    $region32: #{tpu_custom_call.1} parent=1 // pred_region
      %98 = dma.done [#allocation5], 128
    $region33: #{tpu_custom_call.1} parent=1 // pred_fallthru
      _
    // Predicated region
    $region34: #{tpu_custom_call.1} parent=1 // pred_check
      _
    $region35: #{tpu_custom_call.1} parent=1 // pred_check_branch
      %100 = sbr.rel (0) target = $region37
    $region36: #{tpu_custom_call.1} parent=1 // pred_region
      %101 = dma.done [#allocation8], 128
    $region37: #{tpu_custom_call.1} parent=1 // pred_fallthru
      _
    // Predicated region
    $region38: #{tpu_custom_call.1} parent=1 // pred_check
      _
    $region39: #{tpu_custom_call.1} parent=1 // pred_check_branch
      %103 = sbr.rel (0) target = $region41
    $region40: #{tpu_custom_call.1} parent=1 // pred_region
      %104 = dma.done [#allocation8], 128
    $region41: #{tpu_custom_call.1} parent=1 // pred_fallthru
      _
    // Predicated region
    $region42: #{tpu_custom_call.1} parent=1 // pred_check
      _
    $region43: #{tpu_custom_call.1} parent=1 // pred_check_branch
      %106 = sbr.rel (0) target = $region45
    $region44: #{tpu_custom_call.1} parent=1 // pred_region
      %107 = dma.done [#allocation11], 256
    $region45: #{tpu_custom_call.1} parent=1 // pred_fallthru
      _
    // Predicated region
    $region46: #{tpu_custom_call.1} parent=1 // pred_check
      _
    $region47: #{tpu_custom_call.1} parent=1 // pred_check_branch
      %109 = sbr.rel (0) target = $region49
    $region48: #{tpu_custom_call.1} parent=1 // pred_region
      %110 = dma.done [#allocation11], 256
    $region49: #{tpu_custom_call.1} parent=1 // pred_fallthru
      _
    // Predicated region
    $region50: #{tpu_custom_call.1} parent=1 // pred_check
      _
    $region51: #{tpu_custom_call.1} parent=1 // pred_check_branch
      %112 = sbr.rel (0) target = $region53
    $region52: #{tpu_custom_call.1} parent=1 // pred_region
      %113 = dma.done [#allocation14], 256
    $region53: #{tpu_custom_call.1} parent=1 // pred_fallthru
      _
    %s115 = smul.u32 0, 2
    %v116 = vld [vmem:[#allocation4] sm:$0xf]
    %v117 = vld [vmem:[#allocation4 + $0x4] sm:$0xf]
    %v118 = vld [vmem:[#allocation7] sm:$0xf]
    %v119 = vld [vmem:[#allocation7 + $0x4] sm:$0xf]
    %v120 = vld [vmem:[#allocation9] sm:$0xf]
    %v121 = vld [vmem:[#allocation9 + $0x4] sm:$0xf]
    %s122 = smul.u32 0, 4
    %s123 = smul.addr %s122, 4
    %s124 = scalar_lea.vmem [#allocation10], %s123
    %v125 = vld [vmem:[%s124] sm:$0xf]
    %v126 = vld [vmem:[%s124 + $0x4] sm:$0xf]
    %v127 = vld [vmem:[%s124 + $0x8] sm:$0xf]
    %v128 = vld [vmem:[%s124 + $0xc] sm:$0xf]
    %s129 = smul.addr %s122, 4
    %s130 = scalar_lea.vmem %s5, %s129
    %v131 = vld [vmem:[%s130] sm:$0xf]
    %v132 = vld [vmem:[%s130 + $0x4] sm:$0xf]
    %v133 = vld [vmem:[%s130 + $0x8] sm:$0xf]
    %v134 = vld [vmem:[%s130 + $0xc] sm:$0xf]
    %s135 = smul.addr %s122, 4
    %s136 = scalar_lea.vmem [#allocation12], %s135
    %v137 = vld [vmem:[%s136] sm:$0xf]
    %v138 = vld [vmem:[%s136 + $0x4] sm:$0xf]
    %v139 = vld [vmem:[%s136 + $0x8] sm:$0xf]
    %v140 = vld [vmem:[%s136 + $0xc] sm:$0xf]
    %s141 = smul.addr %s122, 4
    %s142 = scalar_lea.vmem [#allocation13], %s141
    %v143 = vld [vmem:[%s142] sm:$0xf]
    %v144 = vld [vmem:[%s142 + $0x4] sm:$0xf]
    %v145 = vld [vmem:[%s142 + $0x8] sm:$0xf]
    %v146 = vld [vmem:[%s142 + $0xc] sm:$0xf]
    %v149 = vunpack.c.l.b16 %v116
    %v150 = vunpack.c.l.b16 %v117
    %v151 = vpack.c.b16 %v150, %v149
    %v156 = vunpack.c.l.b16 %v125
    %v157 = vunpack.c.l.b16 %v126
    %v158 = vunpack.c.l.b16 %v127
    %v159 = vunpack.c.l.b16 %v128
    %v160 = vpack.c.b16 %v157, %v156
    %v161 = vpack.c.b16 %v159, %v158
    %vm164 = vcmask 261120
    %v166 = vsel %vm164, %v151, 0
    %168 = vmatprep.subr.bf16.mxu0 0
    %169 = vmatpush1.bf16.msra.mxu0 %v160
    %170 = vmatprep.subr.bf16.mxu0 0
    %171 = vmatpush1.bf16.msra.mxu0 %v161
    %172 = vmatprep.subr.bf16.mxu0 0
    %173 = vmatpush1.bf16.msra.mxu0 0
    %174 = vmatprep.subr.bf16.mxu0 0
    %175 = vmatpush1.bf16.msra.mxu0 0
    %176 = vmatprep.subr.bf16.mxu0 0
    %177 = vmatpush1.bf16.msra.mxu0 0
    %178 = vmatprep.subr.bf16.mxu0 0
    %179 = vmatpush1.bf16.msra.mxu0 0
    %180 = vmatprep.subr.bf16.mxu0 0
    %181 = vmatpush1.bf16.msra.mxu0 0
    %182 = vmatprep.subr.bf16.mxu0 0
    %183 = vmatpush1.bf16.msra.mxu0 0
    %184 = vmatprep.subr.bf16.mxu0 0
    %185 = vmatpush1.bf16.msra.mxu0 0
    %186 = vmatprep.subr.bf16.mxu0 0
    %187 = vmatpush1.bf16.msra.mxu0 0
    %188 = vmatprep.subr.bf16.mxu0 0
    %189 = vmatpush1.bf16.msra.mxu0 0
    %190 = vmatprep.subr.bf16.mxu0 0
    %191 = vmatpush1.bf16.msra.mxu0 0
    %192 = vmatprep.subr.bf16.mxu0 0
    %193 = vmatpush1.bf16.msra.mxu0 0
    %194 = vmatprep.subr.bf16.mxu0 0
    %195 = vmatpush1.bf16.msra.mxu0 0
    %196 = vmatprep.subr.bf16.mxu0 0
    %197 = vmatpush1.bf16.msra.mxu0 0
    %198 = vmatprep.subr.bf16.mxu0 0
    %199 = vmatpush1.bf16.msra.mxu0 0
    %200 = vmatprep.mubr.bf16.mxu0 0
    %201 = vmatmul.mubr.bf16.gmra.mrb[0].mxu0 %v166
    %v202 = vpop.f32.mrb[0].mxu0
    %v203 = vadd.f32 0.0, %v202
    %v204 = vpop.f32.mrb[0].mxu0
    %v205 = vpop.f32.mrb[0].mxu0
    %v206 = vadd.f32 0.0, %v205
    %v207 = vpop.f32.mrb[0].mxu0
    %208 = vdwg.mxu0
    %v211 = vunpack.c.l.b16 %v118
    %v212 = vunpack.c.l.b16 %v119
    %v213 = vpack.c.b16 %v212, %v211
    %v218 = vunpack.c.l.b16 %v131
    %v219 = vunpack.c.l.b16 %v132
    %v220 = vunpack.c.l.b16 %v133
    %v221 = vunpack.c.l.b16 %v134
    %v222 = vpack.c.b16 %v219, %v218
    %v223 = vpack.c.b16 %v221, %v220
    %v227 = vsel %vm164, %v213, 0
    %229 = vmatprep.subr.bf16.mxu0 0
    %230 = vmatpush1.bf16.msra.mxu0 %v222
    %231 = vmatprep.subr.bf16.mxu0 0
    %232 = vmatpush1.bf16.msra.mxu0 %v223
    %233 = vmatprep.subr.bf16.mxu0 0
    %234 = vmatpush1.bf16.msra.mxu0 0
    %235 = vmatprep.subr.bf16.mxu0 0
    %236 = vmatpush1.bf16.msra.mxu0 0
    %237 = vmatprep.subr.bf16.mxu0 0
    %238 = vmatpush1.bf16.msra.mxu0 0
    %239 = vmatprep.subr.bf16.mxu0 0
    %240 = vmatpush1.bf16.msra.mxu0 0
    %241 = vmatprep.subr.bf16.mxu0 0
    %242 = vmatpush1.bf16.msra.mxu0 0
    %243 = vmatprep.subr.bf16.mxu0 0
    %244 = vmatpush1.bf16.msra.mxu0 0
    %245 = vmatprep.subr.bf16.mxu0 0
    %246 = vmatpush1.bf16.msra.mxu0 0
    %247 = vmatprep.subr.bf16.mxu0 0
    %248 = vmatpush1.bf16.msra.mxu0 0
    %249 = vmatprep.subr.bf16.mxu0 0
    %250 = vmatpush1.bf16.msra.mxu0 0
    %251 = vmatprep.subr.bf16.mxu0 0
    %252 = vmatpush1.bf16.msra.mxu0 0
    %253 = vmatprep.subr.bf16.mxu0 0
    %254 = vmatpush1.bf16.msra.mxu0 0
    %255 = vmatprep.subr.bf16.mxu0 0
    %256 = vmatpush1.bf16.msra.mxu0 0
    %257 = vmatprep.subr.bf16.mxu0 0
    %258 = vmatpush1.bf16.msra.mxu0 0
    %259 = vmatprep.subr.bf16.mxu0 0
    %260 = vmatpush1.bf16.msra.mxu0 0
    %261 = vmatprep.mubr.bf16.mxu0 0
    %262 = vmatmul.mubr.bf16.gmra.mrb[0].mxu0 %v227
    %v263 = vpop.f32.mrb[0].mxu0
    %v264 = vadd.f32 0.0, %v263
    %v265 = vpop.f32.mrb[0].mxu0
    %v266 = vpop.f32.mrb[0].mxu0
    %v267 = vadd.f32 0.0, %v266
    %v268 = vpop.f32.mrb[0].mxu0
    %269 = vdwg.mxu0
    %v272 = vunpack.c.l.b16 %v120
    %v273 = vunpack.c.l.b16 %v121
    %v274 = vpack.c.b16 %v273, %v272
    %v279 = vunpack.c.l.b16 %v137
    %v280 = vunpack.c.l.b16 %v138
    %v281 = vunpack.c.l.b16 %v139
    %v282 = vunpack.c.l.b16 %v140
    %v283 = vpack.c.b16 %v280, %v279
    %v284 = vpack.c.b16 %v282, %v281
    %v288 = vsel %vm164, %v274, 0
    %290 = vmatprep.subr.bf16.mxu0 0
    %291 = vmatpush1.bf16.msra.mxu0 %v283
    %292 = vmatprep.subr.bf16.mxu0 0
    %293 = vmatpush1.bf16.msra.mxu0 %v284
    %294 = vmatprep.subr.bf16.mxu0 0
    %295 = vmatpush1.bf16.msra.mxu0 0
    %296 = vmatprep.subr.bf16.mxu0 0
    %297 = vmatpush1.bf16.msra.mxu0 0
    %298 = vmatprep.subr.bf16.mxu0 0
    %299 = vmatpush1.bf16.msra.mxu0 0
    %300 = vmatprep.subr.bf16.mxu0 0
    %301 = vmatpush1.bf16.msra.mxu0 0
    %302 = vmatprep.subr.bf16.mxu0 0
    %303 = vmatpush1.bf16.msra.mxu0 0
    %304 = vmatprep.subr.bf16.mxu0 0
    %305 = vmatpush1.bf16.msra.mxu0 0
    %306 = vmatprep.subr.bf16.mxu0 0
    %307 = vmatpush1.bf16.msra.mxu0 0
    %308 = vmatprep.subr.bf16.mxu0 0
    %309 = vmatpush1.bf16.msra.mxu0 0
    %310 = vmatprep.subr.bf16.mxu0 0
    %311 = vmatpush1.bf16.msra.mxu0 0
    %312 = vmatprep.subr.bf16.mxu0 0
    %313 = vmatpush1.bf16.msra.mxu0 0
    %314 = vmatprep.subr.bf16.mxu0 0
    %315 = vmatpush1.bf16.msra.mxu0 0
    %316 = vmatprep.subr.bf16.mxu0 0
    %317 = vmatpush1.bf16.msra.mxu0 0
    %318 = vmatprep.subr.bf16.mxu0 0
    %319 = vmatpush1.bf16.msra.mxu0 0
    %320 = vmatprep.subr.bf16.mxu0 0
    %321 = vmatpush1.bf16.msra.mxu0 0
    %322 = vmatprep.mubr.bf16.mxu0 0
    %323 = vmatmul.mubr.bf16.gmra.mrb[0].mxu0 %v288
    %v324 = vpop.f32.mrb[0].mxu0
    %v325 = vadd.f32 0.0, %v324
    %v326 = vpop.f32.mrb[0].mxu0
    %v327 = vpop.f32.mrb[0].mxu0
    %v328 = vadd.f32 0.0, %v327
    %v329 = vpop.f32.mrb[0].mxu0
    %330 = vdwg.mxu0
    %v331 = vlaneseq
    %v332 = vand.u32 %v331, 127
    %s333 = sld [smem:[#allocation3 + %s115]]
    %v334 = vstv %s333
    %s335 = sadd.s32 %s115, 1
    %s336 = sld [smem:[#allocation3 + %s335]]
    %v337 = vstv %s336
    %vm338 = vcmp.lt.s32.totalorder %v332, %v334
    %vm339 = vcmp.lt.s32.totalorder %v332, %v337
    %v340 = vpack.c.bf16 %v203, %v203
    %v341 = vpack.c.bf16 %v206, %v206
    %v342 = vpack.c.bf16 %v264, %v264
    %v343 = vpack.c.bf16 %v267, %v267
    %v344 = vpack.c.bf16 %v325, %v325
    %v345 = vpack.c.bf16 %v328, %v328
    %vm346 = vcmask 64512
    %v348 = vsel %vm346, %v340, 0
    %v351 = vsel %vm346, %v342, 0
    %353 = vmatprep.subr.bf16.mxu0 0
    %354 = vmatpush1.bf16.xpose.msra.mxu0 %v351
    %355 = vmatprep.subr.bf16.mxu0 0
    %356 = vmatpush1.bf16.xpose.msra.mxu0 0
    %357 = vmatprep.subr.bf16.mxu0 0
    %358 = vmatpush1.bf16.xpose.msra.mxu0 0
    %359 = vmatprep.subr.bf16.mxu0 0
    %360 = vmatpush1.bf16.xpose.msra.mxu0 0
    %361 = vmatprep.subr.bf16.mxu0 0
    %362 = vmatpush1.bf16.xpose.msra.mxu0 0
    %363 = vmatprep.subr.bf16.mxu0 0
    %364 = vmatpush1.bf16.xpose.msra.mxu0 0
    %365 = vmatprep.subr.bf16.mxu0 0
    %366 = vmatpush1.bf16.xpose.msra.mxu0 0
    %367 = vmatprep.subr.bf16.mxu0 0
    %368 = vmatpush1.bf16.xpose.msra.mxu0 0
    %369 = vmatprep.subr.bf16.mxu0 0
    %370 = vmatpush1.bf16.xpose.msra.mxu0 0
    %371 = vmatprep.subr.bf16.mxu0 0
    %372 = vmatpush1.bf16.xpose.msra.mxu0 0
    %373 = vmatprep.subr.bf16.mxu0 0
    %374 = vmatpush1.bf16.xpose.msra.mxu0 0
    %375 = vmatprep.subr.bf16.mxu0 0
    %376 = vmatpush1.bf16.xpose.msra.mxu0 0
    %377 = vmatprep.subr.bf16.mxu0 0
    %378 = vmatpush1.bf16.xpose.msra.mxu0 0
    %379 = vmatprep.subr.bf16.mxu0 0
    %380 = vmatpush1.bf16.xpose.msra.mxu0 0
    %381 = vmatprep.subr.bf16.mxu0 0
    %382 = vmatpush1.bf16.xpose.msra.mxu0 0
    %383 = vmatprep.subr.bf16.mxu0 0
    %384 = vmatpush1.bf16.xpose.msra.mxu0 0
    %385 = vmatprep.mubr.bf16.mxu0 0
    %386 = vmatmul.mubr.bf16.gmra.mrb[0].mxu0 %v348
    %v387 = vpop.f32.mrb[0].mxu0
    %v388 = vadd.f32 0.0, %v387
    %v389 = vpop.f32.mrb[0].mxu0
    %v390 = vpop.f32.mrb[0].mxu0
    %v391 = vpop.f32.mrb[0].mxu0
    %392 = vdwg.mxu0
    %v394 = vsel %vm346, %v341, 0
    %v397 = vsel %vm346, %v343, 0
    %399 = vmatprep.subr.bf16.mxu0 0
    %400 = vmatpush1.bf16.xpose.msra.mxu0 %v397
    %401 = vmatprep.subr.bf16.mxu0 0
    %402 = vmatpush1.bf16.xpose.msra.mxu0 0
    %403 = vmatprep.subr.bf16.mxu0 0
    %404 = vmatpush1.bf16.xpose.msra.mxu0 0
    %405 = vmatprep.subr.bf16.mxu0 0
    %406 = vmatpush1.bf16.xpose.msra.mxu0 0
    %407 = vmatprep.subr.bf16.mxu0 0
    %408 = vmatpush1.bf16.xpose.msra.mxu0 0
    %409 = vmatprep.subr.bf16.mxu0 0
    %410 = vmatpush1.bf16.xpose.msra.mxu0 0
    %411 = vmatprep.subr.bf16.mxu0 0
    %412 = vmatpush1.bf16.xpose.msra.mxu0 0
    %413 = vmatprep.subr.bf16.mxu0 0
    %414 = vmatpush1.bf16.xpose.msra.mxu0 0
    %415 = vmatprep.subr.bf16.mxu0 0
    %416 = vmatpush1.bf16.xpose.msra.mxu0 0
    %417 = vmatprep.subr.bf16.mxu0 0
    %418 = vmatpush1.bf16.xpose.msra.mxu0 0
    %419 = vmatprep.subr.bf16.mxu0 0
    %420 = vmatpush1.bf16.xpose.msra.mxu0 0
    %421 = vmatprep.subr.bf16.mxu0 0
    %422 = vmatpush1.bf16.xpose.msra.mxu0 0
    %423 = vmatprep.subr.bf16.mxu0 0
    %424 = vmatpush1.bf16.xpose.msra.mxu0 0
    %425 = vmatprep.subr.bf16.mxu0 0
    %426 = vmatpush1.bf16.xpose.msra.mxu0 0
    %427 = vmatprep.subr.bf16.mxu0 0
    %428 = vmatpush1.bf16.xpose.msra.mxu0 0
    %429 = vmatprep.subr.bf16.mxu0 0
    %430 = vmatpush1.bf16.xpose.msra.mxu0 0
    %431 = vmatprep.mubr.bf16.mxu0 0
    %432 = vmatmul.mubr.bf16.gmra.mrb[0].mxu0 %v394
    %v433 = vpop.f32.mrb[0].mxu0
    %v434 = vadd.f32 0.0, %v433
    %v435 = vpop.f32.mrb[0].mxu0
    %v436 = vpop.f32.mrb[0].mxu0
    %v437 = vpop.f32.mrb[0].mxu0
    %438 = vdwg.mxu0
    %v439 = vsel %vm338, 1, 0
    %v440 = vsel %vm339, 1, 0
    %vm441 = vcmp.eq.s32.totalorder %v439, 1
    %vm442 = vcmp.eq.s32.totalorder %v440, 1
    %v443 = vsel %vm441, %v388, -1000000.0
    %v444 = vsel %vm442, %v434, -1000000.0
    %v445 = vsel %vm346, %v443, -inf
    %446 = vmax.xlane.f32.xlu0 %v445
    %v447 = vpop.xlane.xlu0 %446
    %v448 = vsel %vm346, %v444, -inf
    %449 = vmax.xlane.f32.xlu0 %v448
    %v450 = vpop.xlane.xlu0 %449
    %v451 = vsub.f32 %v443, %v447
    %v452 = vsub.f32 %v444, %v450
    %v453 = vmul.f32 %v451, 1.442695
    %v454 = vpow.pop %v453
    %v455 = vmul.f32 %v452, 1.442695
    %v456 = vpow.pop %v455
    %v457 = vsel %vm346, %v454, 0.0
    %458 = vadd.xlane.f32.xlu0 %v457
    %v459 = vpop.xlane.xlu0 %458
    %v460 = vsel %vm346, %v456, 0.0
    %461 = vadd.xlane.f32.xlu0 %v460
    %v462 = vpop.xlane.xlu0 %461
    %v463 = vrcp.pop %v459
    %v464 = vrcp.pop %v462
    %v465 = vmul.f32 %v454, %v463
    %v466 = vmul.f32 %v456, %v464
    %v467 = vpack.c.bf16 %v465, %v465
    %v468 = vpack.c.bf16 %v466, %v466
    %v470 = vsel %vm346, %v467, 0
    %vm472 = vcmask 1043456
    %v474 = vsel %vm472, %v344, 0
    %476 = vmatprep.subr.bf16.mxu0 0
    %477 = vmatpush1.bf16.msra.mxu0 %v474
    %478 = vmatprep.subr.bf16.mxu0 0
    %479 = vmatpush1.bf16.msra.mxu0 0
    %480 = vmatprep.subr.bf16.mxu0 0
    %481 = vmatpush1.bf16.msra.mxu0 0
    %482 = vmatprep.subr.bf16.mxu0 0
    %483 = vmatpush1.bf16.msra.mxu0 0
    %484 = vmatprep.subr.bf16.mxu0 0
    %485 = vmatpush1.bf16.msra.mxu0 0
    %486 = vmatprep.subr.bf16.mxu0 0
    %487 = vmatpush1.bf16.msra.mxu0 0
    %488 = vmatprep.subr.bf16.mxu0 0
    %489 = vmatpush1.bf16.msra.mxu0 0
    %490 = vmatprep.subr.bf16.mxu0 0
    %491 = vmatpush1.bf16.msra.mxu0 0
    %492 = vmatprep.subr.bf16.mxu0 0
    %493 = vmatpush1.bf16.msra.mxu0 0
    %494 = vmatprep.subr.bf16.mxu0 0
    %495 = vmatpush1.bf16.msra.mxu0 0
    %496 = vmatprep.subr.bf16.mxu0 0
    %497 = vmatpush1.bf16.msra.mxu0 0
    %498 = vmatprep.subr.bf16.mxu0 0
    %499 = vmatpush1.bf16.msra.mxu0 0
    %500 = vmatprep.subr.bf16.mxu0 0
    %501 = vmatpush1.bf16.msra.mxu0 0
    %502 = vmatprep.subr.bf16.mxu0 0
    %503 = vmatpush1.bf16.msra.mxu0 0
    %504 = vmatprep.subr.bf16.mxu0 0
    %505 = vmatpush1.bf16.msra.mxu0 0
    %506 = vmatprep.subr.bf16.mxu0 0
    %507 = vmatpush1.bf16.msra.mxu0 0
    %508 = vmatprep.mubr.bf16.mxu0 0
    %509 = vmatmul.mubr.bf16.gmra.mrb[0].mxu0 %v470
    %v510 = vpop.f32.mrb[0].mxu0
    %v511 = vadd.f32 0.0, %v510
    %v512 = vpop.f32.mrb[0].mxu0
    %v513 = vpop.f32.mrb[0].mxu0
    %v514 = vpop.f32.mrb[0].mxu0
    %515 = vdwg.mxu0
    %v517 = vsel %vm346, %v468, 0
    %v520 = vsel %vm472, %v345, 0
    %522 = vmatprep.subr.bf16.mxu0 0
    %523 = vmatpush1.bf16.msra.mxu0 %v520
    %524 = vmatprep.subr.bf16.mxu0 0
    %525 = vmatpush1.bf16.msra.mxu0 0
    %526 = vmatprep.subr.bf16.mxu0 0
    %527 = vmatpush1.bf16.msra.mxu0 0
    %528 = vmatprep.subr.bf16.mxu0 0
    %529 = vmatpush1.bf16.msra.mxu0 0
    %530 = vmatprep.subr.bf16.mxu0 0
    %531 = vmatpush1.bf16.msra.mxu0 0
    %532 = vmatprep.subr.bf16.mxu0 0
    %533 = vmatpush1.bf16.msra.mxu0 0
    %534 = vmatprep.subr.bf16.mxu0 0
    %535 = vmatpush1.bf16.msra.mxu0 0
    %536 = vmatprep.subr.bf16.mxu0 0
    %537 = vmatpush1.bf16.msra.mxu0 0
    %538 = vmatprep.subr.bf16.mxu0 0
    %539 = vmatpush1.bf16.msra.mxu0 0
    %540 = vmatprep.subr.bf16.mxu0 0
    %541 = vmatpush1.bf16.msra.mxu0 0
    %542 = vmatprep.subr.bf16.mxu0 0
    %543 = vmatpush1.bf16.msra.mxu0 0
    %544 = vmatprep.subr.bf16.mxu0 0
    %545 = vmatpush1.bf16.msra.mxu0 0
    %546 = vmatprep.subr.bf16.mxu0 0
    %547 = vmatpush1.bf16.msra.mxu0 0
    %548 = vmatprep.subr.bf16.mxu0 0
    %549 = vmatpush1.bf16.msra.mxu0 0
    %550 = vmatprep.subr.bf16.mxu0 0
    %551 = vmatpush1.bf16.msra.mxu0 0
    %552 = vmatprep.subr.bf16.mxu0 0
    %553 = vmatpush1.bf16.msra.mxu0 0
    %554 = vmatprep.mubr.bf16.mxu0 0
    %555 = vmatmul.mubr.bf16.gmra.mrb[0].mxu0 %v517
    %v556 = vpop.f32.mrb[0].mxu0
    %v557 = vadd.f32 0.0, %v556
    %v558 = vpop.f32.mrb[0].mxu0
    %v559 = vpop.f32.mrb[0].mxu0
    %v560 = vpop.f32.mrb[0].mxu0
    %561 = vdwg.mxu0
    %563 = vrot.lane.b32.xlu0 %v340, 120
    %v564 = vpop.permute.xlu0 %563
    %566 = vrot.lane.b32.xlu0 %v342, 120
    %v567 = vpop.permute.xlu0 %566
    %v569 = vsel %vm346, %v564, 0
    %v572 = vsel %vm346, %v567, 0
    %574 = vmatprep.subr.bf16.mxu0 0
    %575 = vmatpush1.bf16.xpose.msra.mxu0 %v572
    %576 = vmatprep.subr.bf16.mxu0 0
    %577 = vmatpush1.bf16.xpose.msra.mxu0 0
    %578 = vmatprep.subr.bf16.mxu0 0
    %579 = vmatpush1.bf16.xpose.msra.mxu0 0
    %580 = vmatprep.subr.bf16.mxu0 0
    %581 = vmatpush1.bf16.xpose.msra.mxu0 0
    %582 = vmatprep.subr.bf16.mxu0 0
    %583 = vmatpush1.bf16.xpose.msra.mxu0 0
    %584 = vmatprep.subr.bf16.mxu0 0
    %585 = vmatpush1.bf16.xpose.msra.mxu0 0
    %586 = vmatprep.subr.bf16.mxu0 0
    %587 = vmatpush1.bf16.xpose.msra.mxu0 0
    %588 = vmatprep.subr.bf16.mxu0 0
    %589 = vmatpush1.bf16.xpose.msra.mxu0 0
    %590 = vmatprep.subr.bf16.mxu0 0
    %591 = vmatpush1.bf16.xpose.msra.mxu0 0
    %592 = vmatprep.subr.bf16.mxu0 0
    %593 = vmatpush1.bf16.xpose.msra.mxu0 0
    %594 = vmatprep.subr.bf16.mxu0 0
    %595 = vmatpush1.bf16.xpose.msra.mxu0 0
    %596 = vmatprep.subr.bf16.mxu0 0
    %597 = vmatpush1.bf16.xpose.msra.mxu0 0
    %598 = vmatprep.subr.bf16.mxu0 0
    %599 = vmatpush1.bf16.xpose.msra.mxu0 0
    %600 = vmatprep.subr.bf16.mxu0 0
    %601 = vmatpush1.bf16.xpose.msra.mxu0 0
    %602 = vmatprep.subr.bf16.mxu0 0
    %603 = vmatpush1.bf16.xpose.msra.mxu0 0
    %604 = vmatprep.subr.bf16.mxu0 0
    %605 = vmatpush1.bf16.xpose.msra.mxu0 0
    %606 = vmatprep.mubr.bf16.mxu0 0
    %607 = vmatmul.mubr.bf16.gmra.mrb[0].mxu0 %v569
    %v608 = vpop.f32.mrb[0].mxu0
    %v609 = vadd.f32 0.0, %v608
    %v610 = vpop.f32.mrb[0].mxu0
    %v611 = vpop.f32.mrb[0].mxu0
    %v612 = vpop.f32.mrb[0].mxu0
    %613 = vdwg.mxu0
    %615 = vrot.lane.b32.xlu0 %v341, 120
    %v616 = vpop.permute.xlu0 %615
    %618 = vrot.lane.b32.xlu0 %v343, 120
    %v619 = vpop.permute.xlu0 %618
    %v621 = vsel %vm346, %v616, 0
    %v624 = vsel %vm346, %v619, 0
    %626 = vmatprep.subr.bf16.mxu0 0
    %627 = vmatpush1.bf16.xpose.msra.mxu0 %v624
    %628 = vmatprep.subr.bf16.mxu0 0
    %629 = vmatpush1.bf16.xpose.msra.mxu0 0
    %630 = vmatprep.subr.bf16.mxu0 0
    %631 = vmatpush1.bf16.xpose.msra.mxu0 0
    %632 = vmatprep.subr.bf16.mxu0 0
    %633 = vmatpush1.bf16.xpose.msra.mxu0 0
    %634 = vmatprep.subr.bf16.mxu0 0
    %635 = vmatpush1.bf16.xpose.msra.mxu0 0
    %636 = vmatprep.subr.bf16.mxu0 0
    %637 = vmatpush1.bf16.xpose.msra.mxu0 0
    %638 = vmatprep.subr.bf16.mxu0 0
    %639 = vmatpush1.bf16.xpose.msra.mxu0 0
    %640 = vmatprep.subr.bf16.mxu0 0
    %641 = vmatpush1.bf16.xpose.msra.mxu0 0
    %642 = vmatprep.subr.bf16.mxu0 0
    %643 = vmatpush1.bf16.xpose.msra.mxu0 0
    %644 = vmatprep.subr.bf16.mxu0 0
    %645 = vmatpush1.bf16.xpose.msra.mxu0 0
    %646 = vmatprep.subr.bf16.mxu0 0
    %647 = vmatpush1.bf16.xpose.msra.mxu0 0
    %648 = vmatprep.subr.bf16.mxu0 0
    %649 = vmatpush1.bf16.xpose.msra.mxu0 0
    %650 = vmatprep.subr.bf16.mxu0 0
    %651 = vmatpush1.bf16.xpose.msra.mxu0 0
    %652 = vmatprep.subr.bf16.mxu0 0
    %653 = vmatpush1.bf16.xpose.msra.mxu0 0
    %654 = vmatprep.subr.bf16.mxu0 0
    %655 = vmatpush1.bf16.xpose.msra.mxu0 0
    %656 = vmatprep.subr.bf16.mxu0 0
    %657 = vmatpush1.bf16.xpose.msra.mxu0 0
    %658 = vmatprep.mubr.bf16.mxu0 0
    %659 = vmatmul.mubr.bf16.gmra.mrb[0].mxu0 %v621
    %v660 = vpop.f32.mrb[0].mxu0
    %v661 = vadd.f32 0.0, %v660
    %v662 = vpop.f32.mrb[0].mxu0
    %v663 = vpop.f32.mrb[0].mxu0
    %v664 = vpop.f32.mrb[0].mxu0
    %665 = vdwg.mxu0
    %v666 = vsel %vm441, %v609, -1000000.0
    %v667 = vsel %vm442, %v661, -1000000.0
    %v668 = vsel %vm346, %v666, -inf
    %669 = vmax.xlane.f32.xlu0 %v668
    %v670 = vpop.xlane.xlu0 %669
    %v671 = vsel %vm346, %v667, -inf
    %672 = vmax.xlane.f32.xlu0 %v671
    %v673 = vpop.xlane.xlu0 %672
    %v674 = vsub.f32 %v666, %v670
    %v675 = vsub.f32 %v667, %v673
    %v676 = vmul.f32 %v674, 1.442695
    %v677 = vpow.pop %v676
    %v678 = vmul.f32 %v675, 1.442695
    %v679 = vpow.pop %v678
    %v680 = vsel %vm346, %v677, 0.0
    %681 = vadd.xlane.f32.xlu0 %v680
    %v682 = vpop.xlane.xlu0 %681
    %v683 = vsel %vm346, %v679, 0.0
    %684 = vadd.xlane.f32.xlu0 %v683
    %v685 = vpop.xlane.xlu0 %684
    %v686 = vrcp.pop %v682
    %v687 = vrcp.pop %v685
    %v688 = vmul.f32 %v677, %v686
    %v689 = vmul.f32 %v679, %v687
    %v690 = vpack.c.bf16 %v688, %v688
    %v691 = vpack.c.bf16 %v689, %v689
    %693 = vrot.lane.b32.xlu0 %v344, 120
    %v694 = vpop.permute.xlu0 %693
    %v696 = vsel %vm346, %v690, 0
    %v699 = vsel %vm472, %v694, 0
    %701 = vmatprep.subr.bf16.mxu0 0
    %702 = vmatpush1.bf16.msra.mxu0 %v699
    %703 = vmatprep.subr.bf16.mxu0 0
    %704 = vmatpush1.bf16.msra.mxu0 0
    %705 = vmatprep.subr.bf16.mxu0 0
    %706 = vmatpush1.bf16.msra.mxu0 0
    %707 = vmatprep.subr.bf16.mxu0 0
    %708 = vmatpush1.bf16.msra.mxu0 0
    %709 = vmatprep.subr.bf16.mxu0 0
    %710 = vmatpush1.bf16.msra.mxu0 0
    %711 = vmatprep.subr.bf16.mxu0 0
    %712 = vmatpush1.bf16.msra.mxu0 0
    %713 = vmatprep.subr.bf16.mxu0 0
    %714 = vmatpush1.bf16.msra.mxu0 0
    %715 = vmatprep.subr.bf16.mxu0 0
    %716 = vmatpush1.bf16.msra.mxu0 0
    %717 = vmatprep.subr.bf16.mxu0 0
    %718 = vmatpush1.bf16.msra.mxu0 0
    %719 = vmatprep.subr.bf16.mxu0 0
    %720 = vmatpush1.bf16.msra.mxu0 0
    %721 = vmatprep.subr.bf16.mxu0 0
    %722 = vmatpush1.bf16.msra.mxu0 0
    %723 = vmatprep.subr.bf16.mxu0 0
    %724 = vmatpush1.bf16.msra.mxu0 0
    %725 = vmatprep.subr.bf16.mxu0 0
    %726 = vmatpush1.bf16.msra.mxu0 0
    %727 = vmatprep.subr.bf16.mxu0 0
    %728 = vmatpush1.bf16.msra.mxu0 0
    %729 = vmatprep.subr.bf16.mxu0 0
    %730 = vmatpush1.bf16.msra.mxu0 0
    %731 = vmatprep.subr.bf16.mxu0 0
    %732 = vmatpush1.bf16.msra.mxu0 0
    %733 = vmatprep.mubr.bf16.mxu0 0
    %734 = vmatmul.mubr.bf16.gmra.mrb[0].mxu0 %v696
    %v735 = vpop.f32.mrb[0].mxu0
    %v736 = vadd.f32 0.0, %v735
    %v737 = vpop.f32.mrb[0].mxu0
    %v738 = vpop.f32.mrb[0].mxu0
    %v739 = vpop.f32.mrb[0].mxu0
    %740 = vdwg.mxu0
    %742 = vrot.lane.b32.xlu0 %v345, 120
    %v743 = vpop.permute.xlu0 %742
    %v745 = vsel %vm346, %v691, 0
    %v748 = vsel %vm472, %v743, 0
    %750 = vmatprep.subr.bf16.mxu0 0
    %751 = vmatpush1.bf16.msra.mxu0 %v748
    %752 = vmatprep.subr.bf16.mxu0 0
    %753 = vmatpush1.bf16.msra.mxu0 0
    %754 = vmatprep.subr.bf16.mxu0 0
    %755 = vmatpush1.bf16.msra.mxu0 0
    %756 = vmatprep.subr.bf16.mxu0 0
    %757 = vmatpush1.bf16.msra.mxu0 0
    %758 = vmatprep.subr.bf16.mxu0 0
    %759 = vmatpush1.bf16.msra.mxu0 0
    %760 = vmatprep.subr.bf16.mxu0 0
    %761 = vmatpush1.bf16.msra.mxu0 0
    %762 = vmatprep.subr.bf16.mxu0 0
    %763 = vmatpush1.bf16.msra.mxu0 0
    %764 = vmatprep.subr.bf16.mxu0 0
    %765 = vmatpush1.bf16.msra.mxu0 0
    %766 = vmatprep.subr.bf16.mxu0 0
    %767 = vmatpush1.bf16.msra.mxu0 0
    %768 = vmatprep.subr.bf16.mxu0 0
    %769 = vmatpush1.bf16.msra.mxu0 0
    %770 = vmatprep.subr.bf16.mxu0 0
    %771 = vmatpush1.bf16.msra.mxu0 0
    %772 = vmatprep.subr.bf16.mxu0 0
    %773 = vmatpush1.bf16.msra.mxu0 0
    %774 = vmatprep.subr.bf16.mxu0 0
    %775 = vmatpush1.bf16.msra.mxu0 0
    %776 = vmatprep.subr.bf16.mxu0 0
    %777 = vmatpush1.bf16.msra.mxu0 0
    %778 = vmatprep.subr.bf16.mxu0 0
    %779 = vmatpush1.bf16.msra.mxu0 0
    %780 = vmatprep.subr.bf16.mxu0 0
    %781 = vmatpush1.bf16.msra.mxu0 0
    %782 = vmatprep.mubr.bf16.mxu0 0
    %783 = vmatmul.mubr.bf16.gmra.mrb[0].mxu0 %v745
    %v784 = vpop.f32.mrb[0].mxu0
    %v785 = vadd.f32 0.0, %v784
    %v786 = vpop.f32.mrb[0].mxu0
    %v787 = vpop.f32.mrb[0].mxu0
    %v788 = vpop.f32.mrb[0].mxu0
    %789 = vdwg.mxu0
    %790 = vrot.lane.b32.xlu0 %v340, 112
    %v791 = vpop.permute.xlu0 %790
    %792 = vrot.lane.b32.xlu0 %v342, 112
    %v793 = vpop.permute.xlu0 %792
    %v795 = vsel %vm346, %v791, 0
    %v798 = vsel %vm346, %v793, 0
    %800 = vmatprep.subr.bf16.mxu0 0
    %801 = vmatpush1.bf16.xpose.msra.mxu0 %v798
    %802 = vmatprep.subr.bf16.mxu0 0
    %803 = vmatpush1.bf16.xpose.msra.mxu0 0
    %804 = vmatprep.subr.bf16.mxu0 0
    %805 = vmatpush1.bf16.xpose.msra.mxu0 0
    %806 = vmatprep.subr.bf16.mxu0 0
    %807 = vmatpush1.bf16.xpose.msra.mxu0 0
    %808 = vmatprep.subr.bf16.mxu0 0
    %809 = vmatpush1.bf16.xpose.msra.mxu0 0
    %810 = vmatprep.subr.bf16.mxu0 0
    %811 = vmatpush1.bf16.xpose.msra.mxu0 0
    %812 = vmatprep.subr.bf16.mxu0 0
    %813 = vmatpush1.bf16.xpose.msra.mxu0 0
    %814 = vmatprep.subr.bf16.mxu0 0
    %815 = vmatpush1.bf16.xpose.msra.mxu0 0
    %816 = vmatprep.subr.bf16.mxu0 0
    %817 = vmatpush1.bf16.xpose.msra.mxu0 0
    %818 = vmatprep.subr.bf16.mxu0 0
    %819 = vmatpush1.bf16.xpose.msra.mxu0 0
    %820 = vmatprep.subr.bf16.mxu0 0
    %821 = vmatpush1.bf16.xpose.msra.mxu0 0
    %822 = vmatprep.subr.bf16.mxu0 0
    %823 = vmatpush1.bf16.xpose.msra.mxu0 0
    %824 = vmatprep.subr.bf16.mxu0 0
    %825 = vmatpush1.bf16.xpose.msra.mxu0 0
    %826 = vmatprep.subr.bf16.mxu0 0
    %827 = vmatpush1.bf16.xpose.msra.mxu0 0
    %828 = vmatprep.subr.bf16.mxu0 0
    %829 = vmatpush1.bf16.xpose.msra.mxu0 0
    %830 = vmatprep.subr.bf16.mxu0 0
    %831 = vmatpush1.bf16.xpose.msra.mxu0 0
    %832 = vmatprep.mubr.bf16.mxu0 0
    %833 = vmatmul.mubr.bf16.gmra.mrb[0].mxu0 %v795
    %v834 = vpop.f32.mrb[0].mxu0
    %v835 = vadd.f32 0.0, %v834
    %v836 = vpop.f32.mrb[0].mxu0
    %v837 = vpop.f32.mrb[0].mxu0
    %v838 = vpop.f32.mrb[0].mxu0
    %839 = vdwg.mxu0
    %840 = vrot.lane.b32.xlu0 %v341, 112
    %v841 = vpop.permute.xlu0 %840
    %842 = vrot.lane.b32.xlu0 %v343, 112
    %v843 = vpop.permute.xlu0 %842
    %v845 = vsel %vm346, %v841, 0
    %v848 = vsel %vm346, %v843, 0
    %850 = vmatprep.subr.bf16.mxu0 0
    %851 = vmatpush1.bf16.xpose.msra.mxu0 %v848
    %852 = vmatprep.subr.bf16.mxu0 0
    %853 = vmatpush1.bf16.xpose.msra.mxu0 0
    %854 = vmatprep.subr.bf16.mxu0 0
    %855 = vmatpush1.bf16.xpose.msra.mxu0 0
    %856 = vmatprep.subr.bf16.mxu0 0
    %857 = vmatpush1.bf16.xpose.msra.mxu0 0
    %858 = vmatprep.subr.bf16.mxu0 0
    %859 = vmatpush1.bf16.xpose.msra.mxu0 0
    %860 = vmatprep.subr.bf16.mxu0 0
    %861 = vmatpush1.bf16.xpose.msra.mxu0 0
    %862 = vmatprep.subr.bf16.mxu0 0
    %863 = vmatpush1.bf16.xpose.msra.mxu0 0
    %864 = vmatprep.subr.bf16.mxu0 0
    %865 = vmatpush1.bf16.xpose.msra.mxu0 0
    %866 = vmatprep.subr.bf16.mxu0 0
    %867 = vmatpush1.bf16.xpose.msra.mxu0 0
    %868 = vmatprep.subr.bf16.mxu0 0
    %869 = vmatpush1.bf16.xpose.msra.mxu0 0
    %870 = vmatprep.subr.bf16.mxu0 0
    %871 = vmatpush1.bf16.xpose.msra.mxu0 0
    %872 = vmatprep.subr.bf16.mxu0 0
    %873 = vmatpush1.bf16.xpose.msra.mxu0 0
    %874 = vmatprep.subr.bf16.mxu0 0
    %875 = vmatpush1.bf16.xpose.msra.mxu0 0
    %876 = vmatprep.subr.bf16.mxu0 0
    %877 = vmatpush1.bf16.xpose.msra.mxu0 0
    %878 = vmatprep.subr.bf16.mxu0 0
    %879 = vmatpush1.bf16.xpose.msra.mxu0 0
    %880 = vmatprep.subr.bf16.mxu0 0
    %881 = vmatpush1.bf16.xpose.msra.mxu0 0
    %882 = vmatprep.mubr.bf16.mxu0 0
    %883 = vmatmul.mubr.bf16.gmra.mrb[0].mxu0 %v845
    %v884 = vpop.f32.mrb[0].mxu0
    %v885 = vadd.f32 0.0, %v884
    %v886 = vpop.f32.mrb[0].mxu0
    %v887 = vpop.f32.mrb[0].mxu0
    %v888 = vpop.f32.mrb[0].mxu0
    %889 = vdwg.mxu0
    %v890 = vsel %vm441, %v835, -1000000.0
    %v891 = vsel %vm442, %v885, -1000000.0
    %v892 = vsel %vm346, %v890, -inf
    %893 = vmax.xlane.f32.xlu0 %v892
    %v894 = vpop.xlane.xlu0 %893
    %v895 = vsel %vm346, %v891, -inf
    %896 = vmax.xlane.f32.xlu0 %v895
    %v897 = vpop.xlane.xlu0 %896
    %v898 = vsub.f32 %v890, %v894
    %v899 = vsub.f32 %v891, %v897
    %v900 = vmul.f32 %v898, 1.442695
    %v901 = vpow.pop %v900
    %v902 = vmul.f32 %v899, 1.442695
    %v903 = vpow.pop %v902
    %v904 = vsel %vm346, %v901, 0.0
    %905 = vadd.xlane.f32.xlu0 %v904
    %v906 = vpop.xlane.xlu0 %905
    %v907 = vsel %vm346, %v903, 0.0
    %908 = vadd.xlane.f32.xlu0 %v907
    %v909 = vpop.xlane.xlu0 %908
    %v910 = vrcp.pop %v906
    %v911 = vrcp.pop %v909
    %v912 = vmul.f32 %v901, %v910
    %v913 = vmul.f32 %v903, %v911
    %v914 = vpack.c.bf16 %v912, %v912
    %v915 = vpack.c.bf16 %v913, %v913
    %916 = vrot.lane.b32.xlu0 %v344, 112
    %v917 = vpop.permute.xlu0 %916
    %v919 = vsel %vm346, %v914, 0
    %v922 = vsel %vm472, %v917, 0
    %924 = vmatprep.subr.bf16.mxu0 0
    %925 = vmatpush1.bf16.msra.mxu0 %v922
    %926 = vmatprep.subr.bf16.mxu0 0
    %927 = vmatpush1.bf16.msra.mxu0 0
    %928 = vmatprep.subr.bf16.mxu0 0
    %929 = vmatpush1.bf16.msra.mxu0 0
    %930 = vmatprep.subr.bf16.mxu0 0
    %931 = vmatpush1.bf16.msra.mxu0 0
    %932 = vmatprep.subr.bf16.mxu0 0
    %933 = vmatpush1.bf16.msra.mxu0 0
    %934 = vmatprep.subr.bf16.mxu0 0
    %935 = vmatpush1.bf16.msra.mxu0 0
    %936 = vmatprep.subr.bf16.mxu0 0
    %937 = vmatpush1.bf16.msra.mxu0 0
    %938 = vmatprep.subr.bf16.mxu0 0
    %939 = vmatpush1.bf16.msra.mxu0 0
    %940 = vmatprep.subr.bf16.mxu0 0
    %941 = vmatpush1.bf16.msra.mxu0 0
    %942 = vmatprep.subr.bf16.mxu0 0
    %943 = vmatpush1.bf16.msra.mxu0 0
    %944 = vmatprep.subr.bf16.mxu0 0
    %945 = vmatpush1.bf16.msra.mxu0 0
    %946 = vmatprep.subr.bf16.mxu0 0
    %947 = vmatpush1.bf16.msra.mxu0 0
    %948 = vmatprep.subr.bf16.mxu0 0
    %949 = vmatpush1.bf16.msra.mxu0 0
    %950 = vmatprep.subr.bf16.mxu0 0
    %951 = vmatpush1.bf16.msra.mxu0 0
    %952 = vmatprep.subr.bf16.mxu0 0
    %953 = vmatpush1.bf16.msra.mxu0 0
    %954 = vmatprep.subr.bf16.mxu0 0
    %955 = vmatpush1.bf16.msra.mxu0 0
    %956 = vmatprep.mubr.bf16.mxu0 0
    %957 = vmatmul.mubr.bf16.gmra.mrb[0].mxu0 %v919
    %v958 = vpop.f32.mrb[0].mxu0
    %v959 = vadd.f32 0.0, %v958
    %v960 = vpop.f32.mrb[0].mxu0
    %v961 = vpop.f32.mrb[0].mxu0
    %v962 = vpop.f32.mrb[0].mxu0
    %963 = vdwg.mxu0
    %964 = vrot.lane.b32.xlu0 %v345, 112
    %v965 = vpop.permute.xlu0 %964
    %v967 = vsel %vm346, %v915, 0
    %v970 = vsel %vm472, %v965, 0
    %972 = vmatprep.subr.bf16.mxu0 0
    %973 = vmatpush1.bf16.msra.mxu0 %v970
    %974 = vmatprep.subr.bf16.mxu0 0
    %975 = vmatpush1.bf16.msra.mxu0 0
    %976 = vmatprep.subr.bf16.mxu0 0
    %977 = vmatpush1.bf16.msra.mxu0 0
    %978 = vmatprep.subr.bf16.mxu0 0
    %979 = vmatpush1.bf16.msra.mxu0 0
    %980 = vmatprep.subr.bf16.mxu0 0
    %981 = vmatpush1.bf16.msra.mxu0 0
    %982 = vmatprep.subr.bf16.mxu0 0
    %983 = vmatpush1.bf16.msra.mxu0 0
    %984 = vmatprep.subr.bf16.mxu0 0
    %985 = vmatpush1.bf16.msra.mxu0 0
    %986 = vmatprep.subr.bf16.mxu0 0
    %987 = vmatpush1.bf16.msra.mxu0 0
    %988 = vmatprep.subr.bf16.mxu0 0
    %989 = vmatpush1.bf16.msra.mxu0 0
    %990 = vmatprep.subr.bf16.mxu0 0
    %991 = vmatpush1.bf16.msra.mxu0 0
    %992 = vmatprep.subr.bf16.mxu0 0
    %993 = vmatpush1.bf16.msra.mxu0 0
    %994 = vmatprep.subr.bf16.mxu0 0
    %995 = vmatpush1.bf16.msra.mxu0 0
    %996 = vmatprep.subr.bf16.mxu0 0
    %997 = vmatpush1.bf16.msra.mxu0 0
    %998 = vmatprep.subr.bf16.mxu0 0
    %999 = vmatpush1.bf16.msra.mxu0 0
    %1000 = vmatprep.subr.bf16.mxu0 0
    %1001 = vmatpush1.bf16.msra.mxu0 0
    %1002 = vmatprep.subr.bf16.mxu0 0
    %1003 = vmatpush1.bf16.msra.mxu0 0
    %1004 = vmatprep.mubr.bf16.mxu0 0
    %1005 = vmatmul.mubr.bf16.gmra.mrb[0].mxu0 %v967
    %v1006 = vpop.f32.mrb[0].mxu0
    %v1007 = vadd.f32 0.0, %v1006
    %v1008 = vpop.f32.mrb[0].mxu0
    %v1009 = vpop.f32.mrb[0].mxu0
    %v1010 = vpop.f32.mrb[0].mxu0
    %1011 = vdwg.mxu0
    %1012 = vrot.lane.b32.xlu0 %v340, 104
    %v1013 = vpop.permute.xlu0 %1012
    %1014 = vrot.lane.b32.xlu0 %v342, 104
    %v1015 = vpop.permute.xlu0 %1014
    %v1017 = vsel %vm346, %v1013, 0
    %v1020 = vsel %vm346, %v1015, 0
    %1022 = vmatprep.subr.bf16.mxu0 0
    %1023 = vmatpush1.bf16.xpose.msra.mxu0 %v1020
    %1024 = vmatprep.subr.bf16.mxu0 0
    %1025 = vmatpush1.bf16.xpose.msra.mxu0 0
    %1026 = vmatprep.subr.bf16.mxu0 0
    %1027 = vmatpush1.bf16.xpose.msra.mxu0 0
    %1028 = vmatprep.subr.bf16.mxu0 0
    %1029 = vmatpush1.bf16.xpose.msra.mxu0 0
    %1030 = vmatprep.subr.bf16.mxu0 0
    %1031 = vmatpush1.bf16.xpose.msra.mxu0 0
    %1032 = vmatprep.subr.bf16.mxu0 0
    %1033 = vmatpush1.bf16.xpose.msra.mxu0 0
    %1034 = vmatprep.subr.bf16.mxu0 0
    %1035 = vmatpush1.bf16.xpose.msra.mxu0 0
    %1036 = vmatprep.subr.bf16.mxu0 0
    %1037 = vmatpush1.bf16.xpose.msra.mxu0 0
    %1038 = vmatprep.subr.bf16.mxu0 0
    %1039 = vmatpush1.bf16.xpose.msra.mxu0 0
    %1040 = vmatprep.subr.bf16.mxu0 0
    %1041 = vmatpush1.bf16.xpose.msra.mxu0 0
    %1042 = vmatprep.subr.bf16.mxu0 0
    %1043 = vmatpush1.bf16.xpose.msra.mxu0 0
    %1044 = vmatprep.subr.bf16.mxu0 0
    %1045 = vmatpush1.bf16.xpose.msra.mxu0 0
    %1046 = vmatprep.subr.bf16.mxu0 0
    %1047 = vmatpush1.bf16.xpose.msra.mxu0 0
    %1048 = vmatprep.subr.bf16.mxu0 0
    %1049 = vmatpush1.bf16.xpose.msra.mxu0 0
    %1050 = vmatprep.subr.bf16.mxu0 0
    %1051 = vmatpush1.bf16.xpose.msra.mxu0 0
    %1052 = vmatprep.subr.bf16.mxu0 0
    %1053 = vmatpush1.bf16.xpose.msra.mxu0 0
    %1054 = vmatprep.mubr.bf16.mxu0 0
    %1055 = vmatmul.mubr.bf16.gmra.mrb[0].mxu0 %v1017
    %v1056 = vpop.f32.mrb[0].mxu0
    %v1057 = vadd.f32 0.0, %v1056
    %v1058 = vpop.f32.mrb[0].mxu0
    %v1059 = vpop.f32.mrb[0].mxu0
    %v1060 = vpop.f32.mrb[0].mxu0
    %1061 = vdwg.mxu0
    %1062 = vrot.lane.b32.xlu0 %v341, 104
    %v1063 = vpop.permute.xlu0 %1062
    %1064 = vrot.lane.b32.xlu0 %v343, 104
    %v1065 = vpop.permute.xlu0 %1064
    %v1067 = vsel %vm346, %v1063, 0
    %v1070 = vsel %vm346, %v1065, 0
    %1072 = vmatprep.subr.bf16.mxu0 0
    %1073 = vmatpush1.bf16.xpose.msra.mxu0 %v1070
    %1074 = vmatprep.subr.bf16.mxu0 0
    %1075 = vmatpush1.bf16.xpose.msra.mxu0 0
    %1076 = vmatprep.subr.bf16.mxu0 0
    %1077 = vmatpush1.bf16.xpose.msra.mxu0 0
    %1078 = vmatprep.subr.bf16.mxu0 0
    %1079 = vmatpush1.bf16.xpose.msra.mxu0 0
    %1080 = vmatprep.subr.bf16.mxu0 0
    %1081 = vmatpush1.bf16.xpose.msra.mxu0 0
    %1082 = vmatprep.subr.bf16.mxu0 0
    %1083 = vmatpush1.bf16.xpose.msra.mxu0 0
    %1084 = vmatprep.subr.bf16.mxu0 0
    %1085 = vmatpush1.bf16.xpose.msra.mxu0 0
    %1086 = vmatprep.subr.bf16.mxu0 0
    %1087 = vmatpush1.bf16.xpose.msra.mxu0 0
    %1088 = vmatprep.subr.bf16.mxu0 0
    %1089 = vmatpush1.bf16.xpose.msra.mxu0 0
    %1090 = vmatprep.subr.bf16.mxu0 0
    %1091 = vmatpush1.bf16.xpose.msra.mxu0 0
    %1092 = vmatprep.subr.bf16.mxu0 0
    %1093 = vmatpush1.bf16.xpose.msra.mxu0 0
    %1094 = vmatprep.subr.bf16.mxu0 0
    %1095 = vmatpush1.bf16.xpose.msra.mxu0 0
    %1096 = vmatprep.subr.bf16.mxu0 0
    %1097 = vmatpush1.bf16.xpose.msra.mxu0 0
    %1098 = vmatprep.subr.bf16.mxu0 0
    %1099 = vmatpush1.bf16.xpose.msra.mxu0 0
    %1100 = vmatprep.subr.bf16.mxu0 0
    %1101 = vmatpush1.bf16.xpose.msra.mxu0 0
    %1102 = vmatprep.subr.bf16.mxu0 0
    %1103 = vmatpush1.bf16.xpose.msra.mxu0 0
    %1104 = vmatprep.mubr.bf16.mxu0 0
    %1105 = vmatmul.mubr.bf16.gmra.mrb[0].mxu0 %v1067
    %v1106 = vpop.f32.mrb[0].mxu0
    %v1107 = vadd.f32 0.0, %v1106
    %v1108 = vpop.f32.mrb[0].mxu0
    %v1109 = vpop.f32.mrb[0].mxu0
    %v1110 = vpop.f32.mrb[0].mxu0
    %1111 = vdwg.mxu0
    %v1112 = vsel %vm441, %v1057, -1000000.0
    %v1113 = vsel %vm442, %v1107, -1000000.0
    %v1114 = vsel %vm346, %v1112, -inf
    %1115 = vmax.xlane.f32.xlu0 %v1114
    %v1116 = vpop.xlane.xlu0 %1115
    %v1117 = vsel %vm346, %v1113, -inf
    %1118 = vmax.xlane.f32.xlu0 %v1117
    %v1119 = vpop.xlane.xlu0 %1118
    %v1120 = vsub.f32 %v1112, %v1116
    %v1121 = vsub.f32 %v1113, %v1119
    %v1122 = vmul.f32 %v1120, 1.442695
    %v1123 = vpow.pop %v1122
    %v1124 = vmul.f32 %v1121, 1.442695
    %v1125 = vpow.pop %v1124
    %v1126 = vsel %vm346, %v1123, 0.0
    %1127 = vadd.xlane.f32.xlu0 %v1126
    %v1128 = vpop.xlane.xlu0 %1127
    %v1129 = vsel %vm346, %v1125, 0.0
    %1130 = vadd.xlane.f32.xlu0 %v1129
    %v1131 = vpop.xlane.xlu0 %1130
    %v1132 = vrcp.pop %v1128
    %v1133 = vrcp.pop %v1131
    %v1134 = vmul.f32 %v1123, %v1132
    %v1135 = vmul.f32 %v1125, %v1133
    %v1136 = vpack.c.bf16 %v1134, %v1134
    %v1137 = vpack.c.bf16 %v1135, %v1135
    %1138 = vrot.lane.b32.xlu0 %v344, 104
    %v1139 = vpop.permute.xlu0 %1138
    %v1141 = vsel %vm346, %v1136, 0
    %v1144 = vsel %vm472, %v1139, 0
    %1146 = vmatprep.subr.bf16.mxu0 0
    %1147 = vmatpush1.bf16.msra.mxu0 %v1144
    %1148 = vmatprep.subr.bf16.mxu0 0
    %1149 = vmatpush1.bf16.msra.mxu0 0
    %1150 = vmatprep.subr.bf16.mxu0 0
    %1151 = vmatpush1.bf16.msra.mxu0 0
    %1152 = vmatprep.subr.bf16.mxu0 0
    %1153 = vmatpush1.bf16.msra.mxu0 0
    %1154 = vmatprep.subr.bf16.mxu0 0
    %1155 = vmatpush1.bf16.msra.mxu0 0
    %1156 = vmatprep.subr.bf16.mxu0 0
    %1157 = vmatpush1.bf16.msra.mxu0 0
    %1158 = vmatprep.subr.bf16.mxu0 0
    %1159 = vmatpush1.bf16.msra.mxu0 0
    %1160 = vmatprep.subr.bf16.mxu0 0
    %1161 = vmatpush1.bf16.msra.mxu0 0
    %1162 = vmatprep.subr.bf16.mxu0 0
    %1163 = vmatpush1.bf16.msra.mxu0 0
    %1164 = vmatprep.subr.bf16.mxu0 0
    %1165 = vmatpush1.bf16.msra.mxu0 0
    %1166 = vmatprep.subr.bf16.mxu0 0
    %1167 = vmatpush1.bf16.msra.mxu0 0
    %1168 = vmatprep.subr.bf16.mxu0 0
    %1169 = vmatpush1.bf16.msra.mxu0 0
    %1170 = vmatprep.subr.bf16.mxu0 0
    %1171 = vmatpush1.bf16.msra.mxu0 0
    %1172 = vmatprep.subr.bf16.mxu0 0
    %1173 = vmatpush1.bf16.msra.mxu0 0
    %1174 = vmatprep.subr.bf16.mxu0 0
    %1175 = vmatpush1.bf16.msra.mxu0 0
    %1176 = vmatprep.subr.bf16.mxu0 0
    %1177 = vmatpush1.bf16.msra.mxu0 0
    %1178 = vmatprep.mubr.bf16.mxu0 0
    %1179 = vmatmul.mubr.bf16.gmra.mrb[0].mxu0 %v1141
    %v1180 = vpop.f32.mrb[0].mxu0
    %v1181 = vadd.f32 0.0, %v1180
    %v1182 = vpop.f32.mrb[0].mxu0
    %v1183 = vpop.f32.mrb[0].mxu0
    %v1184 = vpop.f32.mrb[0].mxu0
    %1185 = vdwg.mxu0
    %1186 = vrot.lane.b32.xlu0 %v345, 104
    %v1187 = vpop.permute.xlu0 %1186
    %v1189 = vsel %vm346, %v1137, 0
    %v1192 = vsel %vm472, %v1187, 0
    %1194 = vmatprep.subr.bf16.mxu0 0
    %1195 = vmatpush1.bf16.msra.mxu0 %v1192
    %1196 = vmatprep.subr.bf16.mxu0 0
    %1197 = vmatpush1.bf16.msra.mxu0 0
    %1198 = vmatprep.subr.bf16.mxu0 0
    %1199 = vmatpush1.bf16.msra.mxu0 0
    %1200 = vmatprep.subr.bf16.mxu0 0
    %1201 = vmatpush1.bf16.msra.mxu0 0
    %1202 = vmatprep.subr.bf16.mxu0 0
    %1203 = vmatpush1.bf16.msra.mxu0 0
    %1204 = vmatprep.subr.bf16.mxu0 0
    %1205 = vmatpush1.bf16.msra.mxu0 0
    %1206 = vmatprep.subr.bf16.mxu0 0
    %1207 = vmatpush1.bf16.msra.mxu0 0
    %1208 = vmatprep.subr.bf16.mxu0 0
    %1209 = vmatpush1.bf16.msra.mxu0 0
    %1210 = vmatprep.subr.bf16.mxu0 0
    %1211 = vmatpush1.bf16.msra.mxu0 0
    %1212 = vmatprep.subr.bf16.mxu0 0
    %1213 = vmatpush1.bf16.msra.mxu0 0
    %1214 = vmatprep.subr.bf16.mxu0 0
    %1215 = vmatpush1.bf16.msra.mxu0 0
    %1216 = vmatprep.subr.bf16.mxu0 0
    %1217 = vmatpush1.bf16.msra.mxu0 0
    %1218 = vmatprep.subr.bf16.mxu0 0
    %1219 = vmatpush1.bf16.msra.mxu0 0
    %1220 = vmatprep.subr.bf16.mxu0 0
    %1221 = vmatpush1.bf16.msra.mxu0 0
    %1222 = vmatprep.subr.bf16.mxu0 0
    %1223 = vmatpush1.bf16.msra.mxu0 0
    %1224 = vmatprep.subr.bf16.mxu0 0
    %1225 = vmatpush1.bf16.msra.mxu0 0
    %1226 = vmatprep.mubr.bf16.mxu0 0
    %1227 = vmatmul.mubr.bf16.gmra.mrb[0].mxu0 %v1189
    %v1228 = vpop.f32.mrb[0].mxu0
    %v1229 = vadd.f32 0.0, %v1228
    %v1230 = vpop.f32.mrb[0].mxu0
    %v1231 = vpop.f32.mrb[0].mxu0
    %v1232 = vpop.f32.mrb[0].mxu0
    %1233 = vdwg.mxu0
    %1236 = vrot.lane.b32.xlu0 %v736, 8
    %v1237 = vpop.permute.xlu0 %1236
    %1238 = vrot.lane.b32.xlu0 %v785, 8
    %v1239 = vpop.permute.xlu0 %1238
    %1244 = vrot.lane.b32.xlu0 %v959, 16
    %v1245 = vpop.permute.xlu0 %1244
    %1246 = vrot.lane.b32.xlu0 %v1007, 16
    %v1247 = vpop.permute.xlu0 %1246
    %1252 = vrot.lane.b32.xlu0 %v1181, 24
    %v1253 = vpop.permute.xlu0 %1252
    %1254 = vrot.lane.b32.xlu0 %v1229, 24
    %v1255 = vpop.permute.xlu0 %1254
    %v1258 = vsel %vm346, %v511, %v1237
    %v1259 = vsel %vm346, %v557, %v1239
    %vm1260 = vcmask 130048
    %v1261 = vsel %vm1260, %v1258, %v1245
    %v1262 = vsel %vm1260, %v1259, %v1247
    %vm1263 = vcmask 195584
    %v1264 = vsel %vm1263, %v1261, %v1253
    %v1265 = vsel %vm1263, %v1262, %v1255
    %v1266 = vpack.c.bf16 %v1265, %v1264
    %v1271 = vunpack.c.l.b16 %v143
    %v1272 = vunpack.c.l.b16 %v144
    %v1273 = vunpack.c.l.b16 %v145
    %v1274 = vunpack.c.l.b16 %v146
    %v1275 = vpack.c.b16 %v1272, %v1271
    %v1276 = vpack.c.b16 %v1274, %v1273
    %v1280 = vsel %vm164, %v1266, 0
    %1282 = vmatprep.subr.bf16.mxu0 0
    %1283 = vmatpush1.bf16.msra.mxu0 %v1275
    %1284 = vmatprep.subr.bf16.mxu0 0
    %1285 = vmatpush1.bf16.msra.mxu0 %v1276
    %1286 = vmatprep.subr.bf16.mxu0 0
    %1287 = vmatpush1.bf16.msra.mxu0 0
    %1288 = vmatprep.subr.bf16.mxu0 0
    %1289 = vmatpush1.bf16.msra.mxu0 0
    %1290 = vmatprep.subr.bf16.mxu0 0
    %1291 = vmatpush1.bf16.msra.mxu0 0
    %1292 = vmatprep.subr.bf16.mxu0 0
    %1293 = vmatpush1.bf16.msra.mxu0 0
    %1294 = vmatprep.subr.bf16.mxu0 0
    %1295 = vmatpush1.bf16.msra.mxu0 0
    %1296 = vmatprep.subr.bf16.mxu0 0
    %1297 = vmatpush1.bf16.msra.mxu0 0
    %1298 = vmatprep.subr.bf16.mxu0 0
    %1299 = vmatpush1.bf16.msra.mxu0 0
    %1300 = vmatprep.subr.bf16.mxu0 0
    %1301 = vmatpush1.bf16.msra.mxu0 0
    %1302 = vmatprep.subr.bf16.mxu0 0
    %1303 = vmatpush1.bf16.msra.mxu0 0
    %1304 = vmatprep.subr.bf16.mxu0 0
    %1305 = vmatpush1.bf16.msra.mxu0 0
    %1306 = vmatprep.subr.bf16.mxu0 0
    %1307 = vmatpush1.bf16.msra.mxu0 0
    %1308 = vmatprep.subr.bf16.mxu0 0
    %1309 = vmatpush1.bf16.msra.mxu0 0
    %1310 = vmatprep.subr.bf16.mxu0 0
    %1311 = vmatpush1.bf16.msra.mxu0 0
    %1312 = vmatprep.subr.bf16.mxu0 0
    %1313 = vmatpush1.bf16.msra.mxu0 0
    %1314 = vmatprep.mubr.bf16.mxu0 0
    %1315 = vmatmul.mubr.bf16.gmra.mrb[0].mxu0 %v1280
    %v1316 = vpop.f32.mrb[0].mxu0
    %v1317 = vadd.f32 0.0, %v1316
    %v1318 = vpop.f32.mrb[0].mxu0
    %v1319 = vpop.f32.mrb[0].mxu0
    %v1320 = vadd.f32 0.0, %v1319
    %v1321 = vpop.f32.mrb[0].mxu0
    %1322 = vdwg.mxu0
    %p1323 = scmp.eq.s32.totalorder 0, 0
    // Predicated region
    $region54: #{tpu_custom_call.1} parent=1 // pred_check
      %p1324 = pneg %p1323
    $region55: #{tpu_custom_call.1} parent=1 // pred_check_branch
      %1326 = sbr.rel (%p1324) target = $region57
    $region56: #{tpu_custom_call.1} parent=1 // pred_region
      %1327 = vst [vmem:[#allocation15] sm:$0xff] 0.0
      %1328 = vst [vmem:[#allocation15 + $0x8] sm:$0xff] 0.0
    $region57: #{tpu_custom_call.1} parent=1 // pred_fallthru
      _
    %v1329 = vld [vmem:[#allocation15] sm:$0xff]
    %v1330 = vld [vmem:[#allocation15 + $0x8] sm:$0xff]
    %v1331 = vadd.f32 %v1329, %v1317
    %v1332 = vadd.f32 %v1330, %v1320
    %1333 = vst [vmem:[#allocation15] sm:$0xff] %v1331
    %1334 = vst [vmem:[#allocation15 + $0x8] sm:$0xff] %v1332
    // Predicated region
    $region58: #{tpu_custom_call.1} parent=1 // pred_check
      _
    $region59: #{tpu_custom_call.1} parent=1 // pred_check_branch
      %1336 = sbr.rel (0) target = $region61
    $region60: #{tpu_custom_call.1} parent=1 // pred_region
      %s1338 = ssub.s32 256, 256
      %1339 = vsyncadd [#allocation6], %s1338
      %s1340 = sshll.u32 [#allocation15], 4
      %s1341 = int_to_ptr.vmem [resolvable:$true] %s1340
      %1346 = dma.vmem_to_hbm [thread:$0]  %s1341, 256, %s8, [#allocation6], 128, 128, 8
    $region61: #{tpu_custom_call.1} parent=1 // pred_fallthru
      _
    // Predicated region
    $region62: #{tpu_custom_call.1} parent=1 // pred_check
      _
    $region63: #{tpu_custom_call.1} parent=1 // pred_check_branch
      %1348 = sbr.rel (0) target = $region65
    $region64: #{tpu_custom_call.1} parent=1 // pred_region
      %1349 = dma.done [#allocation6], 256
    $region65: #{tpu_custom_call.1} parent=1 // pred_fallthru
      _
    %1350 = vsyncpa [#allocation5], 1
    %1351 = vsyncpa [#allocation8], 1
    %1352 = vsyncpa [#allocation11], 1
    %1353 = vsyncpa [#allocation14], 1
    %1354 = vsyncpa [#allocation6], 1

</llo_original>
